<compile_context>
chip_gen: v5e
topology: v5e:2x2
jax: 0.10.0
libtpu: 0.0.40
codegen_flags: <defaults>
</compile_context>

<pallas_src>
import functools

import jax
import jax.numpy as jnp
from jax.experimental import pallas as pl
from jax.experimental.pallas import tpu as pltpu

NEG_INF = -1e30


def _round_up(x, m):
    return (x + m - 1) // m * m


def _pad2(a, shape, value=0.0):
    pads = [(0, t - s) for s, t in zip(a.shape, shape)]
    return jnp.pad(a, pads, constant_values=value)


def _full_spec(shape):
    ndim = len(shape)
    # index_map also receives the scalar-prefetch ref(s) -> accept *args.
    return pl.BlockSpec(shape, lambda *args: (0,) * ndim)


def _gin_layer(x, a_bf16, w1, b1, w2, b2, bn_scale, bn_shift, eps):
    # Reassociated GIN update: ((1+eps)x + A x) @ W1 == (1+eps)(x@W1) + A@(x@W1),
    # so the N^2 matmul contracts over `hidden`, not `d_in`.
    y = jnp.dot(x, w1, preferred_element_type=jnp.float32)                 # (N, H)
    agg = jnp.dot(a_bf16, y.astype(jnp.bfloat16),
                  preferred_element_type=jnp.float32)                      # (N, H)
    h = jnp.maximum((1.0 + eps) * y + agg + b1, 0.0)
    h = jnp.maximum(jnp.dot(h, w2, preferred_element_type=jnp.float32) + b2, 0.0)
    return h * bn_scale + bn_shift                                         # eval BN


def _fused_gin_kernel(eps_ref,                                  # SMEM (L,) scalars
                      a_ref, x_ref,                             # graph + features
                      w1_0, b1_0, w2_0, b2_0, s_0, t_0,         # layer-1 params
                      w1_r, b1_r, w2_r, b2_r, s_r, t_r,         # stacked layers 2..L
                      p_ref, l1w, l1b, l2w, l2b,                # pool matrix + head
                      o_ref,                                    # (G_pad, C_pad) out
                      h_ref,                                    # VMEM scratch (N, H)
                      *, num_rest_layers):
    a = a_ref[...]

    # Layer 1 (input width d_in), then layers 2..L (width hidden), h kept in VMEM.
    h_ref[...] = _gin_layer(x_ref[...], a, w1_0[...], b1_0[...], w2_0[...],
                            b2_0[...], s_0[...], t_0[...], eps_ref[0])
    for l in range(num_rest_layers):
        h_ref[...] = _gin_layer(h_ref[...], a, w1_r[l], b1_r[l], w2_r[l],
                                b2_r[l], s_r[l], t_r[l], eps_ref[l + 1])

    # global_mean_pool -> ReLU(lin1) -> (dropout = identity in eval) -> lin2
    # -> log_softmax.  Padded class columns carry a -1e30 bias so they vanish.
    pooled = jnp.dot(p_ref[...], h_ref[...], preferred_element_type=jnp.float32)
    hd = jnp.maximum(
        jnp.dot(pooled, l1w[...], preferred_element_type=jnp.float32) + l1b[...],
        0.0)
    # TODO(synk): F.dropout(p=0.5) is identity in eval mode; training-mode dropout
    # not implemented.
    logits = jnp.dot(hd, l2w[...], preferred_element_type=jnp.float32) + l2b[...]
    m = jnp.max(logits, axis=-1, keepdims=True)
    z = logits - m
    lse = jnp.log(jnp.sum(jnp.exp(z), axis=-1, keepdims=True))
    o_ref[...] = z - lse


# ---------------------------------------------------------------------------
# Full GIN forward (glue in plain JAX: densification + lane padding)
# ---------------------------------------------------------------------------
def gin_forward(params, x, edge_index, batch, num_graphs):
    n, d_in = x.shape
    convs = params["convs"]
    num_layers = len(convs)
    hidden = convs[0]["w2"].shape[0]
    n_cls = params["lin2_w"].shape[1]

    n_pad = _round_up(n, 128)
    din_pad = _round_up(d_in, 128)
    h_pad = _round_up(hidden, 128)
    c_pad = _round_up(n_cls, 128)
    g_pad = _round_up(num_graphs, 8)

    # --- densify graph structure -------------------------------------------
    src, dst = edge_index[0], edge_index[1]
    # A[i, j] = #edges j -> i (source_to_target flow, sum aggregation).
    # Small integer edge counts are exact in bf16 -> half HBM/VMEM, bf16 MXU.
    adj = jnp.zeros((n_pad, n_pad), jnp.float32).at[dst, src].add(1.0)
    adj = adj.astype(jnp.bfloat16)
    # mean-pool matrix P[g, i] = 1/|graph g| if batch[i] == g else 0 (kept f32).
    counts = jnp.zeros((num_graphs,), jnp.float32).at[batch].add(1.0)
    one_hot = (batch[None, :] == jnp.arange(num_graphs)[:, None]).astype(jnp.float32)
    pool = _pad2(one_hot / jnp.maximum(counts, 1.0)[:, None], (g_pad, n_pad))

    x_p = _pad2(x, (n_pad, din_pad))

    # --- pad parameters to lane-dense (multiple-of-128) shapes ---------------
    eps = jnp.stack([c["eps"] for c in convs])                       # (L,) in SMEM

    c0 = convs[0]
    w1_0 = _pad2(c0["w1"], (din_pad, h_pad)); b1_0 = _pad2(c0["b1"], (1, h_pad))
    w2_0 = _pad2(c0["w2"], (h_pad, h_pad));   b2_0 = _pad2(c0["b2"], (1, h_pad))
    s_0 = _pad2(c0["bn_scale"], (1, h_pad));  t_0 = _pad2(c0["bn_shift"], (1, h_pad))

    if num_layers > 1:
        rest = convs[1:]
        w1_r = jnp.stack([_pad2(c["w1"], (h_pad, h_pad)) for c in rest])
        b1_r = jnp.stack([_pad2(c["b1"], (1, h_pad)) for c in rest])
        w2_r = jnp.stack([_pad2(c["w2"], (h_pad, h_pad)) for c in rest])
        b2_r = jnp.stack([_pad2(c["b2"], (1, h_pad)) for c in rest])
        s_r = jnp.stack([_pad2(c["bn_scale"], (1, h_pad)) for c in rest])
        t_r = jnp.stack([_pad2(c["bn_shift"], (1, h_pad)) for c in rest])
    else:  # dummies, never read (num_rest_layers == 0)
        w1_r = jnp.zeros((1, h_pad, h_pad), jnp.float32)
        b1_r = jnp.zeros((1, 1, h_pad), jnp.float32)
        w2_r = jnp.zeros((1, h_pad, h_pad), jnp.float32)
        b2_r = jnp.zeros((1, 1, h_pad), jnp.float32)
        s_r = jnp.zeros((1, 1, h_pad), jnp.float32)
        t_r = jnp.zeros((1, 1, h_pad), jnp.float32)

    l1w = _pad2(params["lin1_w"], (h_pad, h_pad))
    l1b = _pad2(params["lin1_b"], (1, h_pad))
    l2w = _pad2(params["lin2_w"], (h_pad, c_pad))
    # padded class columns get a hugely negative bias -> ignored by log_softmax
    l2b = _pad2(params["lin2_b"], (1, c_pad), value=NEG_INF)

    kernel = functools.partial(_fused_gin_kernel,
                               num_rest_layers=num_layers - 1)

    in_specs = [
        _full_spec(adj.shape), _full_spec(x_p.shape),
        _full_spec(w1_0.shape), _full_spec(b1_0.shape),
        _full_spec(w2_0.shape), _full_spec(b2_0.shape),
        _full_spec(s_0.shape), _full_spec(t_0.shape),
        _full_spec(w1_r.shape), _full_spec(b1_r.shape),
        _full_spec(w2_r.shape), _full_spec(b2_r.shape),
        _full_spec(s_r.shape), _full_spec(t_r.shape),
        _full_spec(pool.shape),
        _full_spec(l1w.shape), _full_spec(l1b.shape),
        _full_spec(l2w.shape), _full_spec(l2b.shape),
    ]

    # TODO(synk): for large N, tile the O(N^2) A@y matmul over node-row blocks
    # (parallel row axis + f32 accumulator) or switch to a scalar-prefetch CSR
    # gather; full-array blocks are used here because the demo graph fits
    # trivially in VMEM.
    out = pl.pallas_call(
        kernel,
        out_shape=jax.ShapeDtypeStruct((g_pad, c_pad), jnp.float32),
        grid_spec=pltpu.PrefetchScalarGridSpec(
            num_scalar_prefetch=1,
            grid=(1,),
            in_specs=in_specs,
            out_specs=_full_spec((g_pad, c_pad)),
            scratch_shapes=[pltpu.VMEM((n_pad, h_pad), jnp.float32)]),
        compiler_params=pltpu.CompilerParams(
            dimension_semantics=("arbitrary",)),
    )(eps, adj, x_p, w1_0, b1_0, w2_0, b2_0, s_0, t_0,
      w1_r, b1_r, w2_r, b2_r, s_r, t_r,
      pool, l1w, l1b, l2w, l2b)

    return out[:num_graphs, :n_cls]


# ---------------------------------------------------------------------------
# Parameter init matching the PyTorch module (eval mode)
# ---------------------------------------------------------------------------
def init_params(key, num_layers, hidden, in_dim=79, num_classes=50):
    def lin(key, d_in, d_out, scale=0.1):
        return scale * jax.random.normal(key, (d_in, d_out), jnp.float32)

    keys = jax.random.split(key, 4 * num_layers + 4)
    convs = []
    d_in = in_dim
    for layer in range(num_layers):
        k1, k2 = keys[2 * layer], keys[2 * layer + 1]
        # BatchNorm1d eval: y = (h - run_mean) / sqrt(run_var + 1e-5) * gamma + beta
        gamma = jnp.ones((hidden,), jnp.float32)
        beta = jnp.zeros((hidden,), jnp.float32)
        run_mean = jnp.zeros((hidden,), jnp.float32)
        run_var = jnp.ones((hidden,), jnp.float32)
        bn_scale = gamma / jnp.sqrt(run_var + 1e-5)
        bn_shift = beta - run_mean * bn_scale
        convs.append({
            "eps": jnp.zeros((), jnp.float32),          # train_eps=True, init 0
            "w1": lin(k1, d_in, hidden),
            "b1": jnp.zeros((1, hidden), jnp.float32),
            "w2": lin(k2, hidden, hidden),
            "b2": jnp.zeros((1, hidden), jnp.float32),
            "bn_scale": bn_scale.reshape(1, hidden),
            "bn_shift": bn_shift.reshape(1, hidden),
        })
        d_in = hidden

    k_l1, k_l2 = keys[-2], keys[-1]
    return {
        "convs": convs,
        "lin1_w": lin(k_l1, hidden, hidden),
        "lin1_b": jnp.zeros((1, hidden), jnp.float32),
        "lin2_w": lin(k_l2, hidden, num_classes),
        "lin2_b": jnp.zeros((1, num_classes), jnp.float32),
    }


if __name__ == "__main__":
    key = jax.random.PRNGKey(0)
    k_x, k_e, k_p = jax.random.split(key, 3)

    num_layers = 3
    hidden = 32
    num_nodes = 16
    num_edges = 40
    num_graphs = 2

    x = jax.random.normal(k_x, (num_nodes, 79), jnp.float32)
    edge_index = jax.random.randint(k_e, (2, num_edges), 0, num_nodes,
                                    dtype=jnp.int32)
    batch = jnp.array([0] * 9 + [1] * 7, dtype=jnp.int32)  # two graphs

    params = init_params(k_p, num_layers, hidden)

    fwd = jax.jit(functools.partial(gin_forward, num_graphs=num_graphs))
    out = fwd(params, x, edge_index, batch)
    jax.block_until_ready(out)

    assert out.shape == (num_graphs, 50)
    assert bool(jnp.all(jnp.isfinite(out)))
    # log_softmax rows should sum to ~1 after exp
    assert bool(jnp.allclose(jnp.exp(out).sum(-1), 1.0, atol=1e-4))
    print("KERNEL_OK")
</pallas_src>

<mosaic_0001>
module attributes {stable_mosaic.version = 11 : i64} {
  func.func @_fused_gin_kernel(%arg0: i32, %arg1: memref<3xf32, #tpu.memory_space<smem>>, %arg2: memref<128x128xbf16, #tpu.memory_space<vmem>>, %arg3: memref<128x128xf32, #tpu.memory_space<vmem>>, %arg4: memref<128x128xf32, #tpu.memory_space<vmem>>, %arg5: memref<1x128xf32, #tpu.memory_space<vmem>>, %arg6: memref<128x128xf32, #tpu.memory_space<vmem>>, %arg7: memref<1x128xf32, #tpu.memory_space<vmem>>, %arg8: memref<1x128xf32, #tpu.memory_space<vmem>>, %arg9: memref<1x128xf32, #tpu.memory_space<vmem>>, %arg10: memref<2x128x128xf32, #tpu.memory_space<vmem>>, %arg11: memref<2x1x128xf32, #tpu.memory_space<vmem>>, %arg12: memref<2x128x128xf32, #tpu.memory_space<vmem>>, %arg13: memref<2x1x128xf32, #tpu.memory_space<vmem>>, %arg14: memref<2x1x128xf32, #tpu.memory_space<vmem>>, %arg15: memref<2x1x128xf32, #tpu.memory_space<vmem>>, %arg16: memref<8x128xf32, #tpu.memory_space<vmem>>, %arg17: memref<128x128xf32, #tpu.memory_space<vmem>>, %arg18: memref<1x128xf32, #tpu.memory_space<vmem>>, %arg19: memref<128x128xf32, #tpu.memory_space<vmem>>, %arg20: memref<1x128xf32, #tpu.memory_space<vmem>>, %arg21: memref<8x128xf32, #tpu.memory_space<vmem>>, %arg22: memref<128x128xf32, #tpu.memory_space<vmem>>) attributes {dimension_semantics = [#tpu.dimension_semantics<arbitrary>], iteration_bounds = array<i64: 1>, scalar_prefetch = 1 : i64, scratch_operands = 1 : i64, tpu.core_type = #tpu.core_type<tc>, window_params = [{pipeline_mode = #tpu.pipeline_mode<synchronous>, transform_indices = @transform_0, window_bounds = array<i64: 128, 128>}, {pipeline_mode = #tpu.pipeline_mode<synchronous>, transform_indices = @transform_1, window_bounds = array<i64: 128, 128>}, {pipeline_mode = #tpu.pipeline_mode<synchronous>, transform_indices = @transform_2, window_bounds = array<i64: 128, 128>}, {pipeline_mode = #tpu.pipeline_mode<synchronous>, transform_indices = @transform_3, window_bounds = array<i64: 1, 128>}, {pipeline_mode = #tpu.pipeline_mode<synchronous>, transform_indices = @transform_4, window_bounds = array<i64: 128, 128>}, {pipeline_mode = #tpu.pipeline_mode<synchronous>, transform_indices = @transform_5, window_bounds = array<i64: 1, 128>}, {pipeline_mode = #tpu.pipeline_mode<synchronous>, transform_indices = @transform_6, window_bounds = array<i64: 1, 128>}, {pipeline_mode = #tpu.pipeline_mode<synchronous>, transform_indices = @transform_7, window_bounds = array<i64: 1, 128>}, {pipeline_mode = #tpu.pipeline_mode<synchronous>, transform_indices = @transform_8, window_bounds = array<i64: 2, 128, 128>}, {pipeline_mode = #tpu.pipeline_mode<synchronous>, transform_indices = @transform_9, window_bounds = array<i64: 2, 1, 128>}, {pipeline_mode = #tpu.pipeline_mode<synchronous>, transform_indices = @transform_10, window_bounds = array<i64: 2, 128, 128>}, {pipeline_mode = #tpu.pipeline_mode<synchronous>, transform_indices = @transform_11, window_bounds = array<i64: 2, 1, 128>}, {pipeline_mode = #tpu.pipeline_mode<synchronous>, transform_indices = @transform_12, window_bounds = array<i64: 2, 1, 128>}, {pipeline_mode = #tpu.pipeline_mode<synchronous>, transform_indices = @transform_13, window_bounds = array<i64: 2, 1, 128>}, {pipeline_mode = #tpu.pipeline_mode<synchronous>, transform_indices = @transform_14, window_bounds = array<i64: 8, 128>}, {pipeline_mode = #tpu.pipeline_mode<synchronous>, transform_indices = @transform_15, window_bounds = array<i64: 128, 128>}, {pipeline_mode = #tpu.pipeline_mode<synchronous>, transform_indices = @transform_16, window_bounds = array<i64: 1, 128>}, {pipeline_mode = #tpu.pipeline_mode<synchronous>, transform_indices = @transform_17, window_bounds = array<i64: 128, 128>}, {pipeline_mode = #tpu.pipeline_mode<synchronous>, transform_indices = @transform_18, window_bounds = array<i64: 1, 128>}, {pipeline_mode = #tpu.pipeline_mode<synchronous>, transform_indices = @transform_19, window_bounds = array<i64: 8, 128>}]} {
    %c0 = arith.constant 0 : index
    %c0_0 = arith.constant 0 : index
    %0 = vector.load %arg2[%c0, %c0_0] : memref<128x128xbf16, #tpu.memory_space<vmem>>, vector<128x128xbf16>
    %c0_1 = arith.constant 0 : index
    %c0_2 = arith.constant 0 : index
    %1 = vector.load %arg3[%c0_1, %c0_2] : memref<128x128xf32, #tpu.memory_space<vmem>>, vector<128x128xf32>
    %c0_3 = arith.constant 0 : index
    %c0_4 = arith.constant 0 : index
    %2 = vector.load %arg4[%c0_3, %c0_4] : memref<128x128xf32, #tpu.memory_space<vmem>>, vector<128x128xf32>
    %c0_5 = arith.constant 0 : index
    %c0_6 = arith.constant 0 : index
    %3 = vector.load %arg5[%c0_5, %c0_6] : memref<1x128xf32, #tpu.memory_space<vmem>>, vector<1x128xf32>
    %c0_7 = arith.constant 0 : index
    %c0_8 = arith.constant 0 : index
    %4 = vector.load %arg6[%c0_7, %c0_8] : memref<128x128xf32, #tpu.memory_space<vmem>>, vector<128x128xf32>
    %c0_9 = arith.constant 0 : index
    %c0_10 = arith.constant 0 : index
    %5 = vector.load %arg7[%c0_9, %c0_10] : memref<1x128xf32, #tpu.memory_space<vmem>>, vector<1x128xf32>
    %c0_11 = arith.constant 0 : index
    %c0_12 = arith.constant 0 : index
    %6 = vector.load %arg8[%c0_11, %c0_12] : memref<1x128xf32, #tpu.memory_space<vmem>>, vector<1x128xf32>
    %c0_13 = arith.constant 0 : index
    %c0_14 = arith.constant 0 : index
    %7 = vector.load %arg9[%c0_13, %c0_14] : memref<1x128xf32, #tpu.memory_space<vmem>>, vector<1x128xf32>
    %c0_15 = arith.constant 0 : index
    %8 = memref.load %arg1[%c0_15] : memref<3xf32, #tpu.memory_space<smem>>
    %cst = arith.constant dense<0.000000e+00> : vector<128x128xf32>
    %9 = tpu.matmul %1, %2, %cst {dimension_numbers = #tpu.dot_dimension_numbers<[1], [0], [0], [1], [0, 0, 1, 1], [], []>} : vector<128x128xf32>, vector<128x128xf32>, vector<128x128xf32> -> vector<128x128xf32>
    %10 = arith.truncf %9 : vector<128x128xf32> to vector<128x128xbf16>
    %cst_16 = arith.constant dense<0.000000e+00> : vector<128x128xf32>
    %11 = tpu.matmul %0, %10, %cst_16 {dimension_numbers = #tpu.dot_dimension_numbers<[1], [0], [0], [1], [0, 0, 1, 1], [], []>} : vector<128x128xbf16>, vector<128x128xbf16>, vector<128x128xf32> -> vector<128x128xf32>
    %cst_17 = arith.constant 1.000000e+00 : f32
    %12 = arith.addf %cst_17, %8 : f32
    %13 = vector.broadcast %12 : f32 to vector<128x128xf32>
    %14 = arith.mulf %13, %9 : vector<128x128xf32>
    %15 = arith.addf %14, %11 : vector<128x128xf32>
    %16 = vector.broadcast %3 : vector<1x128xf32> to vector<128x128xf32>
    %17 = arith.addf %15, %16 : vector<128x128xf32>
    %cst_18 = arith.constant 0.000000e+00 : f32
    %18 = vector.broadcast %cst_18 : f32 to vector<128x128xf32>
    %19 = arith.maximumf %17, %18 : vector<128x128xf32>
    %cst_19 = arith.constant dense<0.000000e+00> : vector<128x128xf32>
    %20 = tpu.matmul %19, %4, %cst_19 {dimension_numbers = #tpu.dot_dimension_numbers<[1], [0], [0], [1], [0, 0, 1, 1], [], []>} : vector<128x128xf32>, vector<128x128xf32>, vector<128x128xf32> -> vector<128x128xf32>
    %21 = vector.broadcast %5 : vector<1x128xf32> to vector<128x128xf32>
    %22 = arith.addf %20, %21 : vector<128x128xf32>
    %cst_20 = arith.constant 0.000000e+00 : f32
    %23 = vector.broadcast %cst_20 : f32 to vector<128x128xf32>
    %24 = arith.maximumf %22, %23 : vector<128x128xf32>
    %25 = vector.broadcast %6 : vector<1x128xf32> to vector<128x128xf32>
    %26 = arith.mulf %24, %25 : vector<128x128xf32>
    %27 = vector.broadcast %7 : vector<1x128xf32> to vector<128x128xf32>
    %28 = arith.addf %26, %27 : vector<128x128xf32>
    %c0_21 = arith.constant 0 : index
    %c0_22 = arith.constant 0 : index
    %29 = vector.load %arg22[%c0_21, %c0_22] : memref<128x128xf32, #tpu.memory_space<vmem>>, vector<128x128xf32>
    tpu.vector_store %arg22[%c0_21, %c0_22], %28 {strides = array<i32>} : memref<128x128xf32, #tpu.memory_space<vmem>>, vector<128x128xf32>,
    %c0_23 = arith.constant 0 : index
    %c0_24 = arith.constant 0 : index
    %30 = vector.load %arg22[%c0_23, %c0_24] : memref<128x128xf32, #tpu.memory_space<vmem>>, vector<128x128xf32>
    %c0_25 = arith.constant 0 : index
    %c0_26 = arith.constant 0 : index
    %c0_27 = arith.constant 0 : index
    %31 = vector.load %arg10[%c0_25, %c0_26, %c0_27] : memref<2x128x128xf32, #tpu.memory_space<vmem>>, vector<1x128x128xf32>
    %32 = vector.shape_cast %31 : vector<1x128x128xf32> to vector<128x128xf32>
    %c0_28 = arith.constant 0 : index
    %c0_29 = arith.constant 0 : index
    %c0_30 = arith.constant 0 : index
    %33 = vector.load %arg11[%c0_28, %c0_29, %c0_30] : memref<2x1x128xf32, #tpu.memory_space<vmem>>, vector<1x1x128xf32>
    %34 = vector.shape_cast %33 : vector<1x1x128xf32> to vector<1x128xf32>
    %c0_31 = arith.constant 0 : index
    %c0_32 = arith.constant 0 : index
    %c0_33 = arith.constant 0 : index
    %35 = vector.load %arg12[%c0_31, %c0_32, %c0_33] : memref<2x128x128xf32, #tpu.memory_space<vmem>>, vector<1x128x128xf32>
    %36 = vector.shape_cast %35 : vector<1x128x128xf32> to vector<128x128xf32>
    %c0_34 = arith.constant 0 : index
    %c0_35 = arith.constant 0 : index
    %c0_36 = arith.constant 0 : index
    %37 = vector.load %arg13[%c0_34, %c0_35, %c0_36] : memref<2x1x128xf32, #tpu.memory_space<vmem>>, vector<1x1x128xf32>
    %38 = vector.shape_cast %37 : vector<1x1x128xf32> to vector<1x128xf32>
    %c0_37 = arith.constant 0 : index
    %c0_38 = arith.constant 0 : index
    %c0_39 = arith.constant 0 : index
    %39 = vector.load %arg14[%c0_37, %c0_38, %c0_39] : memref<2x1x128xf32, #tpu.memory_space<vmem>>, vector<1x1x128xf32>
    %40 = vector.shape_cast %39 : vector<1x1x128xf32> to vector<1x128xf32>
    %c0_40 = arith.constant 0 : index
    %c0_41 = arith.constant 0 : index
    %c0_42 = arith.constant 0 : index
    %41 = vector.load %arg15[%c0_40, %c0_41, %c0_42] : memref<2x1x128xf32, #tpu.memory_space<vmem>>, vector<1x1x128xf32>
    %42 = vector.shape_cast %41 : vector<1x1x128xf32> to vector<1x128xf32>
    %c1 = arith.constant 1 : index
    %43 = memref.load %arg1[%c1] : memref<3xf32, #tpu.memory_space<smem>>
    %cst_43 = arith.constant dense<0.000000e+00> : vector<128x128xf32>
    %44 = tpu.matmul %30, %32, %cst_43 {dimension_numbers = #tpu.dot_dimension_numbers<[1], [0], [0], [1], [0, 0, 1, 1], [], []>} : vector<128x128xf32>, vector<128x128xf32>, vector<128x128xf32> -> vector<128x128xf32>
    %45 = arith.truncf %44 : vector<128x128xf32> to vector<128x128xbf16>
    %cst_44 = arith.constant dense<0.000000e+00> : vector<128x128xf32>
    %46 = tpu.matmul %0, %45, %cst_44 {dimension_numbers = #tpu.dot_dimension_numbers<[1], [0], [0], [1], [0, 0, 1, 1], [], []>} : vector<128x128xbf16>, vector<128x128xbf16>, vector<128x128xf32> -> vector<128x128xf32>
    %cst_45 = arith.constant 1.000000e+00 : f32
    %47 = arith.addf %cst_45, %43 : f32
    %48 = vector.broadcast %47 : f32 to vector<128x128xf32>
    %49 = arith.mulf %48, %44 : vector<128x128xf32>
    %50 = arith.addf %49, %46 : vector<128x128xf32>
    %51 = vector.broadcast %34 : vector<1x128xf32> to vector<128x128xf32>
    %52 = arith.addf %50, %51 : vector<128x128xf32>
    %cst_46 = arith.constant 0.000000e+00 : f32
    %53 = vector.broadcast %cst_46 : f32 to vector<128x128xf32>
    %54 = arith.maximumf %52, %53 : vector<128x128xf32>
    %cst_47 = arith.constant dense<0.000000e+00> : vector<128x128xf32>
    %55 = tpu.matmul %54, %36, %cst_47 {dimension_numbers = #tpu.dot_dimension_numbers<[1], [0], [0], [1], [0, 0, 1, 1], [], []>} : vector<128x128xf32>, vector<128x128xf32>, vector<128x128xf32> -> vector<128x128xf32>
    %56 = vector.broadcast %38 : vector<1x128xf32> to vector<128x128xf32>
    %57 = arith.addf %55, %56 : vector<128x128xf32>
    %cst_48 = arith.constant 0.000000e+00 : f32
    %58 = vector.broadcast %cst_48 : f32 to vector<128x128xf32>
    %59 = arith.maximumf %57, %58 : vector<128x128xf32>
    %60 = vector.broadcast %40 : vector<1x128xf32> to vector<128x128xf32>
    %61 = arith.mulf %59, %60 : vector<128x128xf32>
    %62 = vector.broadcast %42 : vector<1x128xf32> to vector<128x128xf32>
    %63 = arith.addf %61, %62 : vector<128x128xf32>
    %c0_49 = arith.constant 0 : index
    %c0_50 = arith.constant 0 : index
    %64 = vector.load %arg22[%c0_49, %c0_50] : memref<128x128xf32, #tpu.memory_space<vmem>>, vector<128x128xf32>
    tpu.vector_store %arg22[%c0_49, %c0_50], %63 {strides = array<i32>} : memref<128x128xf32, #tpu.memory_space<vmem>>, vector<128x128xf32>,
    %c0_51 = arith.constant 0 : index
    %c0_52 = arith.constant 0 : index
    %65 = vector.load %arg22[%c0_51, %c0_52] : memref<128x128xf32, #tpu.memory_space<vmem>>, vector<128x128xf32>
    %c1_53 = arith.constant 1 : index
    %c0_54 = arith.constant 0 : index
    %c0_55 = arith.constant 0 : index
    %66 = vector.load %arg10[%c1_53, %c0_54, %c0_55] : memref<2x128x128xf32, #tpu.memory_space<vmem>>, vector<1x128x128xf32>
    %67 = vector.shape_cast %66 : vector<1x128x128xf32> to vector<128x128xf32>
    %c1_56 = arith.constant 1 : index
    %c0_57 = arith.constant 0 : index
    %c0_58 = arith.constant 0 : index
    %68 = vector.load %arg11[%c1_56, %c0_57, %c0_58] : memref<2x1x128xf32, #tpu.memory_space<vmem>>, vector<1x1x128xf32>
    %69 = vector.shape_cast %68 : vector<1x1x128xf32> to vector<1x128xf32>
    %c1_59 = arith.constant 1 : index
    %c0_60 = arith.constant 0 : index
    %c0_61 = arith.constant 0 : index
    %70 = vector.load %arg12[%c1_59, %c0_60, %c0_61] : memref<2x128x128xf32, #tpu.memory_space<vmem>>, vector<1x128x128xf32>
    %71 = vector.shape_cast %70 : vector<1x128x128xf32> to vector<128x128xf32>
    %c1_62 = arith.constant 1 : index
    %c0_63 = arith.constant 0 : index
    %c0_64 = arith.constant 0 : index
    %72 = vector.load %arg13[%c1_62, %c0_63, %c0_64] : memref<2x1x128xf32, #tpu.memory_space<vmem>>, vector<1x1x128xf32>
    %73 = vector.shape_cast %72 : vector<1x1x128xf32> to vector<1x128xf32>
    %c1_65 = arith.constant 1 : index
    %c0_66 = arith.constant 0 : index
    %c0_67 = arith.constant 0 : index
    %74 = vector.load %arg14[%c1_65, %c0_66, %c0_67] : memref<2x1x128xf32, #tpu.memory_space<vmem>>, vector<1x1x128xf32>
    %75 = vector.shape_cast %74 : vector<1x1x128xf32> to vector<1x128xf32>
    %c1_68 = arith.constant 1 : index
    %c0_69 = arith.constant 0 : index
    %c0_70 = arith.constant 0 : index
    %76 = vector.load %arg15[%c1_68, %c0_69, %c0_70] : memref<2x1x128xf32, #tpu.memory_space<vmem>>, vector<1x1x128xf32>
    %77 = vector.shape_cast %76 : vector<1x1x128xf32> to vector<1x128xf32>
    %c2 = arith.constant 2 : index
    %78 = memref.load %arg1[%c2] : memref<3xf32, #tpu.memory_space<smem>>
    %cst_71 = arith.constant dense<0.000000e+00> : vector<128x128xf32>
    %79 = tpu.matmul %65, %67, %cst_71 {dimension_numbers = #tpu.dot_dimension_numbers<[1], [0], [0], [1], [0, 0, 1, 1], [], []>} : vector<128x128xf32>, vector<128x128xf32>, vector<128x128xf32> -> vector<128x128xf32>
    %80 = arith.truncf %79 : vector<128x128xf32> to vector<128x128xbf16>
    %cst_72 = arith.constant dense<0.000000e+00> : vector<128x128xf32>
    %81 = tpu.matmul %0, %80, %cst_72 {dimension_numbers = #tpu.dot_dimension_numbers<[1], [0], [0], [1], [0, 0, 1, 1], [], []>} : vector<128x128xbf16>, vector<128x128xbf16>, vector<128x128xf32> -> vector<128x128xf32>
    %cst_73 = arith.constant 1.000000e+00 : f32
    %82 = arith.addf %cst_73, %78 : f32
    %83 = vector.broadcast %82 : f32 to vector<128x128xf32>
    %84 = arith.mulf %83, %79 : vector<128x128xf32>
    %85 = arith.addf %84, %81 : vector<128x128xf32>
    %86 = vector.broadcast %69 : vector<1x128xf32> to vector<128x128xf32>
    %87 = arith.addf %85, %86 : vector<128x128xf32>
    %cst_74 = arith.constant 0.000000e+00 : f32
    %88 = vector.broadcast %cst_74 : f32 to vector<128x128xf32>
    %89 = arith.maximumf %87, %88 : vector<128x128xf32>
    %cst_75 = arith.constant dense<0.000000e+00> : vector<128x128xf32>
    %90 = tpu.matmul %89, %71, %cst_75 {dimension_numbers = #tpu.dot_dimension_numbers<[1], [0], [0], [1], [0, 0, 1, 1], [], []>} : vector<128x128xf32>, vector<128x128xf32>, vector<128x128xf32> -> vector<128x128xf32>
    %91 = vector.broadcast %73 : vector<1x128xf32> to vector<128x128xf32>
    %92 = arith.addf %90, %91 : vector<128x128xf32>
    %cst_76 = arith.constant 0.000000e+00 : f32
    %93 = vector.broadcast %cst_76 : f32 to vector<128x128xf32>
    %94 = arith.maximumf %92, %93 : vector<128x128xf32>
    %95 = vector.broadcast %75 : vector<1x128xf32> to vector<128x128xf32>
    %96 = arith.mulf %94, %95 : vector<128x128xf32>
    %97 = vector.broadcast %77 : vector<1x128xf32> to vector<128x128xf32>
    %98 = arith.addf %96, %97 : vector<128x128xf32>
    %c0_77 = arith.constant 0 : index
    %c0_78 = arith.constant 0 : index
    %99 = vector.load %arg22[%c0_77, %c0_78] : memref<128x128xf32, #tpu.memory_space<vmem>>, vector<128x128xf32>
    tpu.vector_store %arg22[%c0_77, %c0_78], %98 {strides = array<i32>} : memref<128x128xf32, #tpu.memory_space<vmem>>, vector<128x128xf32>,
    %c0_79 = arith.constant 0 : index
    %c0_80 = arith.constant 0 : index
    %100 = vector.load %arg16[%c0_79, %c0_80] : memref<8x128xf32, #tpu.memory_space<vmem>>, vector<8x128xf32>
    %c0_81 = arith.constant 0 : index
    %c0_82 = arith.constant 0 : index
    %101 = vector.load %arg22[%c0_81, %c0_82] : memref<128x128xf32, #tpu.memory_space<vmem>>, vector<128x128xf32>
    %cst_83 = arith.constant dense<0.000000e+00> : vector<8x128xf32>
    %102 = tpu.matmul %100, %101, %cst_83 {dimension_numbers = #tpu.dot_dimension_numbers<[1], [0], [0], [1], [0, 0, 1, 1], [], []>} : vector<8x128xf32>, vector<128x128xf32>, vector<8x128xf32> -> vector<8x128xf32>
    %c0_84 = arith.constant 0 : index
    %c0_85 = arith.constant 0 : index
    %103 = vector.load %arg17[%c0_84, %c0_85] : memref<128x128xf32, #tpu.memory_space<vmem>>, vector<128x128xf32>
    %cst_86 = arith.constant dense<0.000000e+00> : vector<8x128xf32>
    %104 = tpu.matmul %102, %103, %cst_86 {dimension_numbers = #tpu.dot_dimension_numbers<[1], [0], [0], [1], [0, 0, 1, 1], [], []>} : vector<8x128xf32>, vector<128x128xf32>, vector<8x128xf32> -> vector<8x128xf32>
    %c0_87 = arith.constant 0 : index
    %c0_88 = arith.constant 0 : index
    %105 = vector.load %arg18[%c0_87, %c0_88] : memref<1x128xf32, #tpu.memory_space<vmem>>, vector<1x128xf32>
    %106 = vector.broadcast %105 : vector<1x128xf32> to vector<8x128xf32>
    %107 = arith.addf %104, %106 : vector<8x128xf32>
    %cst_89 = arith.constant 0.000000e+00 : f32
    %108 = vector.broadcast %cst_89 : f32 to vector<8x128xf32>
    %109 = arith.maximumf %107, %108 : vector<8x128xf32>
    %c0_90 = arith.constant 0 : index
    %c0_91 = arith.constant 0 : index
    %110 = vector.load %arg19[%c0_90, %c0_91] : memref<128x128xf32, #tpu.memory_space<vmem>>, vector<128x128xf32>
    %cst_92 = arith.constant dense<0.000000e+00> : vector<8x128xf32>
    %111 = tpu.matmul %109, %110, %cst_92 {dimension_numbers = #tpu.dot_dimension_numbers<[1], [0], [0], [1], [0, 0, 1, 1], [], []>} : vector<8x128xf32>, vector<128x128xf32>, vector<8x128xf32> -> vector<8x128xf32>
    %c0_93 = arith.constant 0 : index
    %c0_94 = arith.constant 0 : index
    %112 = vector.load %arg20[%c0_93, %c0_94] : memref<1x128xf32, #tpu.memory_space<vmem>>, vector<1x128xf32>
    %113 = vector.broadcast %112 : vector<1x128xf32> to vector<8x128xf32>
    %114 = arith.addf %111, %113 : vector<8x128xf32>
    %cst_95 = arith.constant dense<0xFF800000> : vector<8xf32>
    %115 = vector.multi_reduction <maximumf>, %114, %cst_95 [1] : vector<8x128xf32> to vector<8xf32>
    %116 = vector.shape_cast %115 : vector<8xf32> to vector<8x1xf32>
    %117 = vector.broadcast %116 : vector<8x1xf32> to vector<8x128xf32>
    %118 = arith.subf %114, %117 : vector<8x128xf32>
    %119 = math.exp %118 : vector<8x128xf32>
    %cst_96 = arith.constant dense<0.000000e+00> : vector<8xf32>
    %120 = vector.multi_reduction <add>, %119, %cst_96 [1] : vector<8x128xf32> to vector<8xf32>
    %121 = vector.shape_cast %120 : vector<8xf32> to vector<8x1xf32>
    %122 = math.log %121 : vector<8x1xf32>
    %123 = vector.broadcast %122 : vector<8x1xf32> to vector<8x128xf32>
    %124 = arith.subf %118, %123 : vector<8x128xf32>
    %c0_97 = arith.constant 0 : index
    %c0_98 = arith.constant 0 : index
    %125 = vector.load %arg21[%c0_97, %c0_98] : memref<8x128xf32, #tpu.memory_space<vmem>>, vector<8x128xf32>
    tpu.vector_store %arg21[%c0_97, %c0_98], %124 {strides = array<i32>} : memref<8x128xf32, #tpu.memory_space<vmem>>, vector<8x128xf32>,
    return
  }
  func.func @transform_0(%arg0: i32, %arg1: memref<3xf32, #tpu.memory_space<smem>>) -> (i32, i32) {
    %c0_i32 = arith.constant 0 : i32
    %c0_i32_0 = arith.constant 0 : i32
    %c0_i32_1 = arith.constant 0 : i32
    return %c0_i32, %c0_i32_0 : i32, i32
  }
  func.func @transform_1(%arg0: i32, %arg1: memref<3xf32, #tpu.memory_space<smem>>) -> (i32, i32) {
    %c0_i32 = arith.constant 0 : i32
    %c0_i32_0 = arith.constant 0 : i32
    %c0_i32_1 = arith.constant 0 : i32
    return %c0_i32, %c0_i32_0 : i32, i32
  }
  func.func @transform_2(%arg0: i32, %arg1: memref<3xf32, #tpu.memory_space<smem>>) -> (i32, i32) {
    %c0_i32 = arith.constant 0 : i32
    %c0_i32_0 = arith.constant 0 : i32
    %c0_i32_1 = arith.constant 0 : i32
    return %c0_i32, %c0_i32_0 : i32, i32
  }
  func.func @transform_3(%arg0: i32, %arg1: memref<3xf32, #tpu.memory_space<smem>>) -> (i32, i32) {
    %c0_i32 = arith.constant 0 : i32
    %c0_i32_0 = arith.constant 0 : i32
    %c0_i32_1 = arith.constant 0 : i32
    return %c0_i32, %c0_i32_0 : i32, i32
  }
  func.func @transform_4(%arg0: i32, %arg1: memref<3xf32, #tpu.memory_space<smem>>) -> (i32, i32) {
    %c0_i32 = arith.constant 0 : i32
    %c0_i32_0 = arith.constant 0 : i32
    %c0_i32_1 = arith.constant 0 : i32
    return %c0_i32, %c0_i32_0 : i32, i32
  }
  func.func @transform_5(%arg0: i32, %arg1: memref<3xf32, #tpu.memory_space<smem>>) -> (i32, i32) {
    %c0_i32 = arith.constant 0 : i32
    %c0_i32_0 = arith.constant 0 : i32
    %c0_i32_1 = arith.constant 0 : i32
    return %c0_i32, %c0_i32_0 : i32, i32
  }
  func.func @transform_6(%arg0: i32, %arg1: memref<3xf32, #tpu.memory_space<smem>>) -> (i32, i32) {
    %c0_i32 = arith.constant 0 : i32
    %c0_i32_0 = arith.constant 0 : i32
    %c0_i32_1 = arith.constant 0 : i32
    return %c0_i32, %c0_i32_0 : i32, i32
  }
  func.func @transform_7(%arg0: i32, %arg1: memref<3xf32, #tpu.memory_space<smem>>) -> (i32, i32) {
    %c0_i32 = arith.constant 0 : i32
    %c0_i32_0 = arith.constant 0 : i32
    %c0_i32_1 = arith.constant 0 : i32
    return %c0_i32, %c0_i32_0 : i32, i32
  }
  func.func @transform_8(%arg0: i32, %arg1: memref<3xf32, #tpu.memory_space<smem>>) -> (i32, i32, i32) {
    %c0_i32 = arith.constant 0 : i32
    %c0_i32_0 = arith.constant 0 : i32
    %c0_i32_1 = arith.constant 0 : i32
    %c0_i32_2 = arith.constant 0 : i32
    return %c0_i32, %c0_i32_0, %c0_i32_1 : i32, i32, i32
  }
  func.func @transform_9(%arg0: i32, %arg1: memref<3xf32, #tpu.memory_space<smem>>) -> (i32, i32, i32) {
    %c0_i32 = arith.constant 0 : i32
    %c0_i32_0 = arith.constant 0 : i32
    %c0_i32_1 = arith.constant 0 : i32
    %c0_i32_2 = arith.constant 0 : i32
    return %c0_i32, %c0_i32_0, %c0_i32_1 : i32, i32, i32
  }
  func.func @transform_10(%arg0: i32, %arg1: memref<3xf32, #tpu.memory_space<smem>>) -> (i32, i32, i32) {
    %c0_i32 = arith.constant 0 : i32
    %c0_i32_0 = arith.constant 0 : i32
    %c0_i32_1 = arith.constant 0 : i32
    %c0_i32_2 = arith.constant 0 : i32
    return %c0_i32, %c0_i32_0, %c0_i32_1 : i32, i32, i32
  }
  func.func @transform_11(%arg0: i32, %arg1: memref<3xf32, #tpu.memory_space<smem>>) -> (i32, i32, i32) {
    %c0_i32 = arith.constant 0 : i32
    %c0_i32_0 = arith.constant 0 : i32
    %c0_i32_1 = arith.constant 0 : i32
    %c0_i32_2 = arith.constant 0 : i32
    return %c0_i32, %c0_i32_0, %c0_i32_1 : i32, i32, i32
  }
  func.func @transform_12(%arg0: i32, %arg1: memref<3xf32, #tpu.memory_space<smem>>) -> (i32, i32, i32) {
    %c0_i32 = arith.constant 0 : i32
    %c0_i32_0 = arith.constant 0 : i32
    %c0_i32_1 = arith.constant 0 : i32
    %c0_i32_2 = arith.constant 0 : i32
    return %c0_i32, %c0_i32_0, %c0_i32_1 : i32, i32, i32
  }
  func.func @transform_13(%arg0: i32, %arg1: memref<3xf32, #tpu.memory_space<smem>>) -> (i32, i32, i32) {
    %c0_i32 = arith.constant 0 : i32
    %c0_i32_0 = arith.constant 0 : i32
    %c0_i32_1 = arith.constant 0 : i32
    %c0_i32_2 = arith.constant 0 : i32
    return %c0_i32, %c0_i32_0, %c0_i32_1 : i32, i32, i32
  }
  func.func @transform_14(%arg0: i32, %arg1: memref<3xf32, #tpu.memory_space<smem>>) -> (i32, i32) {
    %c0_i32 = arith.constant 0 : i32
    %c0_i32_0 = arith.constant 0 : i32
    %c0_i32_1 = arith.constant 0 : i32
    return %c0_i32, %c0_i32_0 : i32, i32
  }
  func.func @transform_15(%arg0: i32, %arg1: memref<3xf32, #tpu.memory_space<smem>>) -> (i32, i32) {
    %c0_i32 = arith.constant 0 : i32
    %c0_i32_0 = arith.constant 0 : i32
    %c0_i32_1 = arith.constant 0 : i32
    return %c0_i32, %c0_i32_0 : i32, i32
  }
  func.func @transform_16(%arg0: i32, %arg1: memref<3xf32, #tpu.memory_space<smem>>) -> (i32, i32) {
    %c0_i32 = arith.constant 0 : i32
    %c0_i32_0 = arith.constant 0 : i32
    %c0_i32_1 = arith.constant 0 : i32
    return %c0_i32, %c0_i32_0 : i32, i32
  }
  func.func @transform_17(%arg0: i32, %arg1: memref<3xf32, #tpu.memory_space<smem>>) -> (i32, i32) {
    %c0_i32 = arith.constant 0 : i32
    %c0_i32_0 = arith.constant 0 : i32
    %c0_i32_1 = arith.constant 0 : i32
    return %c0_i32, %c0_i32_0 : i32, i32
  }
  func.func @transform_18(%arg0: i32, %arg1: memref<3xf32, #tpu.memory_space<smem>>) -> (i32, i32) {
    %c0_i32 = arith.constant 0 : i32
    %c0_i32_0 = arith.constant 0 : i32
    %c0_i32_1 = arith.constant 0 : i32
    return %c0_i32, %c0_i32_0 : i32, i32
  }
  func.func @transform_19(%arg0: i32, %arg1: memref<3xf32, #tpu.memory_space<smem>>) -> (i32, i32) {
    %c0_i32 = arith.constant 0 : i32
    %c0_i32_0 = arith.constant 0 : i32
    %c0_i32_1 = arith.constant 0 : i32
    return %c0_i32, %c0_i32_0 : i32, i32
  }
}

</mosaic_0001>

<llo_original>
// kernel: gin_forward.1
$region0: #{gin_forward.1}
  #allocation0 [shape = 'u32[]', space=smem, size = 0x4, offset = 0x4, fixed_abs, tag = 'smem constant byte address 0x4 - core index']
  #allocation1 [shape = 'u32[72,128]{1,0:T(1,128)}', space=vmem, size = 0x9000, scoped, tag = 'internal scratch']
  #allocation2 [shape = 'f32[128,128]{1,0:T(8,128)}', space=vmem, size = 0x10000, scoped, tag = 'scratch operand']
  #allocation3 [shape = 's32[1]{0}', space=sflag, size = 0x4, scoped, tag = 'scoped memory for gin_forward.1']
  #allocation4 [shape = 'u8[512]{0}', space=smem, size = 0x200, scoped, tag = 'prefetched SMEM operand 0']
  %s0 = inlined_call_operand.vmem [shape: f32[3], index: 0, kind: input, shape index: {}]
  %s1 = inlined_call_operand.vmem [shape: bf16[128,128], index: 1, kind: input, shape index: {}]
  %s2 = inlined_call_operand.vmem [shape: f32[128,128], index: 2, kind: input, shape index: {}]
  %s3 = inlined_call_operand.vmem [shape: f32[128,128], index: 3, kind: input, shape index: {}]
  %s4 = inlined_call_operand.vmem [shape: f32[1,128], index: 4, kind: input, shape index: {}]
  %s5 = inlined_call_operand.vmem [shape: f32[128,128], index: 5, kind: input, shape index: {}]
  %s6 = inlined_call_operand.vmem [shape: f32[1,128], index: 6, kind: input, shape index: {}]
  %s7 = inlined_call_operand.vmem [shape: f32[1,128], index: 7, kind: input, shape index: {}]
  %s8 = inlined_call_operand.vmem [shape: f32[1,128], index: 8, kind: input, shape index: {}]
  %s9 = inlined_call_operand.vmem [shape: f32[2,128,128], index: 9, kind: input, shape index: {}]
  %s10 = inlined_call_operand.vmem [shape: f32[2,1,128], index: 10, kind: input, shape index: {}]
  %s11 = inlined_call_operand.vmem [shape: f32[2,128,128], index: 11, kind: input, shape index: {}]
  %s12 = inlined_call_operand.vmem [shape: f32[2,1,128], index: 12, kind: input, shape index: {}]
  %s13 = inlined_call_operand.vmem [shape: f32[2,1,128], index: 13, kind: input, shape index: {}]
  %s14 = inlined_call_operand.vmem [shape: f32[2,1,128], index: 14, kind: input, shape index: {}]
  %s15 = inlined_call_operand.vmem [shape: f32[8,128], index: 15, kind: input, shape index: {}]
  %s16 = inlined_call_operand.vmem [shape: f32[128,128], index: 16, kind: input, shape index: {}]
  %s17 = inlined_call_operand.vmem [shape: f32[1,128], index: 17, kind: input, shape index: {}]
  %s18 = inlined_call_operand.vmem [shape: f32[128,128], index: 18, kind: input, shape index: {}]
  %s19 = inlined_call_operand.vmem [shape: f32[1,128], index: 19, kind: input, shape index: {}]
  %s20 = inlined_call_operand.vmem [shape: f32[8,128], index: 20, kind: output, shape index: {}]
  %s21 = sld [smem:[#allocation0]]
  $region86: #{gin_forward.1} parent=0
    _
  %s23 = ssub.s32 1, %s21
  %s24 = scalar_select 0, %s23, %s21
  %s26 = sshll.u32 %s0, 4
  %s27 = int_to_ptr.vmem [resolvable:$true] %s26
  %29 = dma.vmem_to_smem %s27, 16, [#allocation4], [#allocation3]
  %31 = dma.done [#allocation3], 16
  %32 = sfence
  // Predicated region
  $region2: #{gin_forward.1} parent=0 // pred_check
    _
  $region3: #{gin_forward.1} parent=0 // pred_check_branch
    %34 = sbr.rel (0) target = $region5
  $region4: #{gin_forward.1} parent=0 // pred_region
    _
  $region5: #{gin_forward.1} parent=0 // pred_fallthru
    _
  // Predicated region
  $region6: #{gin_forward.1} parent=0 // pred_check
    _
  $region7: #{gin_forward.1} parent=0 // pred_check_branch
    %36 = sbr.rel (0) target = $region9
  $region8: #{gin_forward.1} parent=0 // pred_region
    _
  $region9: #{gin_forward.1} parent=0 // pred_fallthru
    _
  // Predicated region
  $region10: #{gin_forward.1} parent=0 // pred_check
    _
  $region11: #{gin_forward.1} parent=0 // pred_check_branch
    %38 = sbr.rel (0) target = $region13
  $region12: #{gin_forward.1} parent=0 // pred_region
    _
  $region13: #{gin_forward.1} parent=0 // pred_fallthru
    _
  // Predicated region
  $region14: #{gin_forward.1} parent=0 // pred_check
    _
  $region15: #{gin_forward.1} parent=0 // pred_check_branch
    %40 = sbr.rel (0) target = $region17
  $region16: #{gin_forward.1} parent=0 // pred_region
    _
  $region17: #{gin_forward.1} parent=0 // pred_fallthru
    _
  // Predicated region
  $region18: #{gin_forward.1} parent=0 // pred_check
    _
  $region19: #{gin_forward.1} parent=0 // pred_check_branch
    %42 = sbr.rel (0) target = $region21
  $region20: #{gin_forward.1} parent=0 // pred_region
    _
  $region21: #{gin_forward.1} parent=0 // pred_fallthru
    _
  // Predicated region
  $region22: #{gin_forward.1} parent=0 // pred_check
    _
  $region23: #{gin_forward.1} parent=0 // pred_check_branch
    %44 = sbr.rel (0) target = $region25
  $region24: #{gin_forward.1} parent=0 // pred_region
    _
  $region25: #{gin_forward.1} parent=0 // pred_fallthru
    _
  // Predicated region
  $region26: #{gin_forward.1} parent=0 // pred_check
    _
  $region27: #{gin_forward.1} parent=0 // pred_check_branch
    %46 = sbr.rel (0) target = $region29
  $region28: #{gin_forward.1} parent=0 // pred_region
    _
  $region29: #{gin_forward.1} parent=0 // pred_fallthru
    _
  // Predicated region
  $region30: #{gin_forward.1} parent=0 // pred_check
    _
  $region31: #{gin_forward.1} parent=0 // pred_check_branch
    %48 = sbr.rel (0) target = $region33
  $region32: #{gin_forward.1} parent=0 // pred_region
    _
  $region33: #{gin_forward.1} parent=0 // pred_fallthru
    _
  // Predicated region
  $region34: #{gin_forward.1} parent=0 // pred_check
    _
  $region35: #{gin_forward.1} parent=0 // pred_check_branch
    %50 = sbr.rel (0) target = $region37
  $region36: #{gin_forward.1} parent=0 // pred_region
    _
  $region37: #{gin_forward.1} parent=0 // pred_fallthru
    _
  // Predicated region
  $region38: #{gin_forward.1} parent=0 // pred_check
    _
  $region39: #{gin_forward.1} parent=0 // pred_check_branch
    %52 = sbr.rel (0) target = $region41
  $region40: #{gin_forward.1} parent=0 // pred_region
    _
  $region41: #{gin_forward.1} parent=0 // pred_fallthru
    _
  // Predicated region
  $region42: #{gin_forward.1} parent=0 // pred_check
    _
  $region43: #{gin_forward.1} parent=0 // pred_check_branch
    %54 = sbr.rel (0) target = $region45
  $region44: #{gin_forward.1} parent=0 // pred_region
    _
  $region45: #{gin_forward.1} parent=0 // pred_fallthru
    _
  // Predicated region
  $region46: #{gin_forward.1} parent=0 // pred_check
    _
  $region47: #{gin_forward.1} parent=0 // pred_check_branch
    %56 = sbr.rel (0) target = $region49
  $region48: #{gin_forward.1} parent=0 // pred_region
    _
  $region49: #{gin_forward.1} parent=0 // pred_fallthru
    _
  // Predicated region
  $region50: #{gin_forward.1} parent=0 // pred_check
    _
  $region51: #{gin_forward.1} parent=0 // pred_check_branch
    %58 = sbr.rel (0) target = $region53
  $region52: #{gin_forward.1} parent=0 // pred_region
    _
  $region53: #{gin_forward.1} parent=0 // pred_fallthru
    _
  // Predicated region
  $region54: #{gin_forward.1} parent=0 // pred_check
    _
  $region55: #{gin_forward.1} parent=0 // pred_check_branch
    %60 = sbr.rel (0) target = $region57
  $region56: #{gin_forward.1} parent=0 // pred_region
    _
  $region57: #{gin_forward.1} parent=0 // pred_fallthru
    _
  // Predicated region
  $region58: #{gin_forward.1} parent=0 // pred_check
    _
  $region59: #{gin_forward.1} parent=0 // pred_check_branch
    %62 = sbr.rel (0) target = $region61
  $region60: #{gin_forward.1} parent=0 // pred_region
    _
  $region61: #{gin_forward.1} parent=0 // pred_fallthru
    _
  // Predicated region
  $region62: #{gin_forward.1} parent=0 // pred_check
    _
  $region63: #{gin_forward.1} parent=0 // pred_check_branch
    %64 = sbr.rel (0) target = $region65
  $region64: #{gin_forward.1} parent=0 // pred_region
    _
  $region65: #{gin_forward.1} parent=0 // pred_fallthru
    _
  // Predicated region
  $region66: #{gin_forward.1} parent=0 // pred_check
    _
  $region67: #{gin_forward.1} parent=0 // pred_check_branch
    %66 = sbr.rel (0) target = $region69
  $region68: #{gin_forward.1} parent=0 // pred_region
    _
  $region69: #{gin_forward.1} parent=0 // pred_fallthru
    _
  // Predicated region
  $region70: #{gin_forward.1} parent=0 // pred_check
    _
  $region71: #{gin_forward.1} parent=0 // pred_check_branch
    %68 = sbr.rel (0) target = $region73
  $region72: #{gin_forward.1} parent=0 // pred_region
    _
  $region73: #{gin_forward.1} parent=0 // pred_fallthru
    _
  // Predicated region
  $region74: #{gin_forward.1} parent=0 // pred_check
    _
  $region75: #{gin_forward.1} parent=0 // pred_check_branch
    %70 = sbr.rel (0) target = $region77
  $region76: #{gin_forward.1} parent=0 // pred_region
    _
  $region77: #{gin_forward.1} parent=0 // pred_fallthru
    _
  %v71 = vld [vmem:[%s1] sm:$0xf]
  %v72 = vld [vmem:[%s1 + $0x4] sm:$0xf]
  %v73 = vld [vmem:[%s1 + $0x8] sm:$0xf]
  %v74 = vld [vmem:[%s1 + $0xc] sm:$0xf]
  %v75 = vld [vmem:[%s1 + $0x10] sm:$0xf]
  %v76 = vld [vmem:[%s1 + $0x14] sm:$0xf]
  %v77 = vld [vmem:[%s1 + $0x18] sm:$0xf]
  %v78 = vld [vmem:[%s1 + $0x1c] sm:$0xf]
  %v79 = vld [vmem:[%s1 + $0x20] sm:$0xf]
  %v80 = vld [vmem:[%s1 + $0x24] sm:$0xf]
  %v81 = vld [vmem:[%s1 + $0x28] sm:$0xf]
  %v82 = vld [vmem:[%s1 + $0x2c] sm:$0xf]
  %v83 = vld [vmem:[%s1 + $0x30] sm:$0xf]
  %v84 = vld [vmem:[%s1 + $0x34] sm:$0xf]
  %v85 = vld [vmem:[%s1 + $0x38] sm:$0xf]
  %v86 = vld [vmem:[%s1 + $0x3c] sm:$0xf]
  %v87 = vld [vmem:[%s2] sm:$0xff]
  %v88 = vld [vmem:[%s2 + $0x8] sm:$0xff]
  %v89 = vld [vmem:[%s2 + $0x10] sm:$0xff]
  %v90 = vld [vmem:[%s2 + $0x18] sm:$0xff]
  %v91 = vld [vmem:[%s2 + $0x20] sm:$0xff]
  %v92 = vld [vmem:[%s2 + $0x28] sm:$0xff]
  %v93 = vld [vmem:[%s2 + $0x30] sm:$0xff]
  %v94 = vld [vmem:[%s2 + $0x38] sm:$0xff]
  %v95 = vld [vmem:[%s2 + $0x40] sm:$0xff]
  %v96 = vld [vmem:[%s2 + $0x48] sm:$0xff]
  %v97 = vld [vmem:[%s2 + $0x50] sm:$0xff]
  %v98 = vld [vmem:[%s2 + $0x58] sm:$0xff]
  %v99 = vld [vmem:[%s2 + $0x60] sm:$0xff]
  %v100 = vld [vmem:[%s2 + $0x68] sm:$0xff]
  %v101 = vld [vmem:[%s2 + $0x70] sm:$0xff]
  %v102 = vld [vmem:[%s2 + $0x78] sm:$0xff]
  %v103 = vld [vmem:[%s3] sm:$0xff]
  %v104 = vld [vmem:[%s3 + $0x8] sm:$0xff]
  %v105 = vld [vmem:[%s3 + $0x10] sm:$0xff]
  %v106 = vld [vmem:[%s3 + $0x18] sm:$0xff]
  %v107 = vld [vmem:[%s3 + $0x20] sm:$0xff]
  %v108 = vld [vmem:[%s3 + $0x28] sm:$0xff]
  %v109 = vld [vmem:[%s3 + $0x30] sm:$0xff]
  %v110 = vld [vmem:[%s3 + $0x38] sm:$0xff]
  %v111 = vld [vmem:[%s3 + $0x40] sm:$0xff]
  %v112 = vld [vmem:[%s3 + $0x48] sm:$0xff]
  %v113 = vld [vmem:[%s3 + $0x50] sm:$0xff]
  %v114 = vld [vmem:[%s3 + $0x58] sm:$0xff]
  %v115 = vld [vmem:[%s3 + $0x60] sm:$0xff]
  %v116 = vld [vmem:[%s3 + $0x68] sm:$0xff]
  %v117 = vld [vmem:[%s3 + $0x70] sm:$0xff]
  %v118 = vld [vmem:[%s3 + $0x78] sm:$0xff]
  %v119 = vld [vmem:[%s4] sm:$0x1]
  %v120 = vld [vmem:[%s5] sm:$0xff]
  %v121 = vld [vmem:[%s5 + $0x8] sm:$0xff]
  %v122 = vld [vmem:[%s5 + $0x10] sm:$0xff]
  %v123 = vld [vmem:[%s5 + $0x18] sm:$0xff]
  %v124 = vld [vmem:[%s5 + $0x20] sm:$0xff]
  %v125 = vld [vmem:[%s5 + $0x28] sm:$0xff]
  %v126 = vld [vmem:[%s5 + $0x30] sm:$0xff]
  %v127 = vld [vmem:[%s5 + $0x38] sm:$0xff]
  %v128 = vld [vmem:[%s5 + $0x40] sm:$0xff]
  %v129 = vld [vmem:[%s5 + $0x48] sm:$0xff]
  %v130 = vld [vmem:[%s5 + $0x50] sm:$0xff]
  %v131 = vld [vmem:[%s5 + $0x58] sm:$0xff]
  %v132 = vld [vmem:[%s5 + $0x60] sm:$0xff]
  %v133 = vld [vmem:[%s5 + $0x68] sm:$0xff]
  %v134 = vld [vmem:[%s5 + $0x70] sm:$0xff]
  %v135 = vld [vmem:[%s5 + $0x78] sm:$0xff]
  %v136 = vld [vmem:[%s6] sm:$0x1]
  %v137 = vld [vmem:[%s7] sm:$0x1]
  %v138 = vld [vmem:[%s8] sm:$0x1]
  %s139 = sld [smem:[#allocation4]]
  %140 = vmatpush.msra.mxu0 %v118
  %141 = vmatpush.msra.mxu0 %v117
  %142 = vmatpush.msra.mxu0 %v116
  %143 = vmatpush.msra.mxu0 %v115
  %144 = vmatpush.msra.mxu0 %v114
  %145 = vmatpush.msra.mxu0 %v113
  %146 = vmatpush.msra.mxu0 %v112
  %147 = vmatpush.msra.mxu0 %v111
  %148 = vmatpush.msra.mxu0 %v110
  %149 = vmatpush.msra.mxu0 %v109
  %150 = vmatpush.msra.mxu0 %v108
  %151 = vmatpush.msra.mxu0 %v107
  %152 = vmatpush.msra.mxu0 %v106
  %153 = vmatpush.msra.mxu0 %v105
  %154 = vmatpush.msra.mxu0 %v104
  %155 = vmatpush.msra.mxu0 %v103
  %156 = vmatmul.f32.gmra.mxu0 %v87
  %v157 = vpop.f32.mrf.mxu0
  %v158 = vadd.f32 0.0, %v157
  %159 = vmatmul.f32.gmra.mxu0 %v88
  %v160 = vpop.f32.mrf.mxu0
  %v161 = vadd.f32 0.0, %v160
  %162 = vmatmul.f32.gmra.mxu0 %v89
  %v163 = vpop.f32.mrf.mxu0
  %v164 = vadd.f32 0.0, %v163
  %165 = vmatmul.f32.gmra.mxu0 %v90
  %v166 = vpop.f32.mrf.mxu0
  %v167 = vadd.f32 0.0, %v166
  %168 = vmatmul.f32.gmra.mxu0 %v91
  %v169 = vpop.f32.mrf.mxu0
  %v170 = vadd.f32 0.0, %v169
  %171 = vmatmul.f32.gmra.mxu0 %v92
  %v172 = vpop.f32.mrf.mxu0
  %v173 = vadd.f32 0.0, %v172
  %174 = vmatmul.f32.gmra.mxu0 %v93
  %v175 = vpop.f32.mrf.mxu0
  %v176 = vadd.f32 0.0, %v175
  %177 = vmatmul.f32.gmra.mxu0 %v94
  %v178 = vpop.f32.mrf.mxu0
  %v179 = vadd.f32 0.0, %v178
  %180 = vmatmul.f32.gmra.mxu0 %v95
  %v181 = vpop.f32.mrf.mxu0
  %v182 = vadd.f32 0.0, %v181
  %183 = vmatmul.f32.gmra.mxu0 %v96
  %v184 = vpop.f32.mrf.mxu0
  %v185 = vadd.f32 0.0, %v184
  %186 = vmatmul.f32.gmra.mxu0 %v97
  %v187 = vpop.f32.mrf.mxu0
  %v188 = vadd.f32 0.0, %v187
  %189 = vmatmul.f32.gmra.mxu0 %v98
  %v190 = vpop.f32.mrf.mxu0
  %v191 = vadd.f32 0.0, %v190
  %192 = vmatmul.f32.gmra.mxu0 %v99
  %v193 = vpop.f32.mrf.mxu0
  %v194 = vadd.f32 0.0, %v193
  %195 = vmatmul.f32.gmra.mxu0 %v100
  %v196 = vpop.f32.mrf.mxu0
  %v197 = vadd.f32 0.0, %v196
  %198 = vmatmul.f32.gmra.mxu0 %v101
  %v199 = vpop.f32.mrf.mxu0
  %v200 = vadd.f32 0.0, %v199
  %201 = vmatmul.f32.gmra.mxu0 %v102
  %v202 = vpop.f32.mrf.mxu0
  %v203 = vadd.f32 0.0, %v202
  %204 = vdwg.mxu0
  %v205 = vpack.c.bf16 %v161, %v158
  %v206 = vpack.c.bf16 %v167, %v164
  %v207 = vpack.c.bf16 %v173, %v170
  %v208 = vpack.c.bf16 %v179, %v176
  %v209 = vpack.c.bf16 %v185, %v182
  %v210 = vpack.c.bf16 %v191, %v188
  %v211 = vpack.c.bf16 %v197, %v194
  %v212 = vpack.c.bf16 %v203, %v200
  %v229 = vunpack.c.l.b16 %v71
  %v230 = vunpack.c.l.b16 %v72
  %v231 = vunpack.c.l.b16 %v73
  %v232 = vunpack.c.l.b16 %v74
  %v233 = vunpack.c.l.b16 %v75
  %v234 = vunpack.c.l.b16 %v76
  %v235 = vunpack.c.l.b16 %v77
  %v236 = vunpack.c.l.b16 %v78
  %v237 = vunpack.c.l.b16 %v79
  %v238 = vunpack.c.l.b16 %v80
  %v239 = vunpack.c.l.b16 %v81
  %v240 = vunpack.c.l.b16 %v82
  %v241 = vunpack.c.l.b16 %v83
  %v242 = vunpack.c.l.b16 %v84
  %v243 = vunpack.c.l.b16 %v85
  %v244 = vunpack.c.l.b16 %v86
  %v245 = vpack.c.b16 %v230, %v229
  %v246 = vpack.c.b16 %v232, %v231
  %v247 = vpack.c.b16 %v234, %v233
  %v248 = vpack.c.b16 %v236, %v235
  %v249 = vpack.c.b16 %v238, %v237
  %v250 = vpack.c.b16 %v240, %v239
  %v251 = vpack.c.b16 %v242, %v241
  %v252 = vpack.c.b16 %v244, %v243
  %261 = vmatpush.bf16.msra.mxu0 %v212
  %262 = vmatpush.bf16.msra.mxu0 %v211
  %263 = vmatpush.bf16.msra.mxu0 %v210
  %264 = vmatpush.bf16.msra.mxu0 %v209
  %265 = vmatpush.bf16.msra.mxu0 %v208
  %266 = vmatpush.bf16.msra.mxu0 %v207
  %267 = vmatpush.bf16.msra.mxu0 %v206
  %268 = vmatpush.bf16.msra.mxu0 %v205
  %269 = vmatmul.bf16.gmra.mxu0 %v245
  %v270 = vpop.f32.mrf.mxu0
  %v271 = vadd.f32 0.0, %v270
  %v272 = vpop.f32.mrf.mxu0
  %v273 = vadd.f32 0.0, %v272
  %274 = vmatmul.bf16.gmra.mxu0 %v246
  %v275 = vpop.f32.mrf.mxu0
  %v276 = vadd.f32 0.0, %v275
  %v277 = vpop.f32.mrf.mxu0
  %v278 = vadd.f32 0.0, %v277
  %279 = vmatmul.bf16.gmra.mxu0 %v247
  %v280 = vpop.f32.mrf.mxu0
  %v281 = vadd.f32 0.0, %v280
  %v282 = vpop.f32.mrf.mxu0
  %v283 = vadd.f32 0.0, %v282
  %284 = vmatmul.bf16.gmra.mxu0 %v248
  %v285 = vpop.f32.mrf.mxu0
  %v286 = vadd.f32 0.0, %v285
  %v287 = vpop.f32.mrf.mxu0
  %v288 = vadd.f32 0.0, %v287
  %289 = vmatmul.bf16.gmra.mxu0 %v249
  %v290 = vpop.f32.mrf.mxu0
  %v291 = vadd.f32 0.0, %v290
  %v292 = vpop.f32.mrf.mxu0
  %v293 = vadd.f32 0.0, %v292
  %294 = vmatmul.bf16.gmra.mxu0 %v250
  %v295 = vpop.f32.mrf.mxu0
  %v296 = vadd.f32 0.0, %v295
  %v297 = vpop.f32.mrf.mxu0
  %v298 = vadd.f32 0.0, %v297
  %299 = vmatmul.bf16.gmra.mxu0 %v251
  %v300 = vpop.f32.mrf.mxu0
  %v301 = vadd.f32 0.0, %v300
  %v302 = vpop.f32.mrf.mxu0
  %v303 = vadd.f32 0.0, %v302
  %304 = vmatmul.bf16.gmra.mxu0 %v252
  %v305 = vpop.f32.mrf.mxu0
  %v306 = vadd.f32 0.0, %v305
  %v307 = vpop.f32.mrf.mxu0
  %v308 = vadd.f32 0.0, %v307
  %309 = vdwg.mxu0
  %s310 = sadd.f32 %s139, 1.0
  %v311 = vstv %s310
  %v312 = vmul.f32 %v311, %v158
  %v313 = vmul.f32 %v311, %v161
  %v314 = vmul.f32 %v311, %v164
  %v315 = vmul.f32 %v311, %v167
  %v316 = vmul.f32 %v311, %v170
  %v317 = vmul.f32 %v311, %v173
  %v318 = vmul.f32 %v311, %v176
  %v319 = vmul.f32 %v311, %v179
  %v320 = vmul.f32 %v311, %v182
  %v321 = vmul.f32 %v311, %v185
  %v322 = vmul.f32 %v311, %v188
  %v323 = vmul.f32 %v311, %v191
  %v324 = vmul.f32 %v311, %v194
  %v325 = vmul.f32 %v311, %v197
  %v326 = vmul.f32 %v311, %v200
  %v327 = vmul.f32 %v311, %v203
  %v328 = vadd.f32 %v312, %v271
  %v329 = vadd.f32 %v313, %v273
  %v330 = vadd.f32 %v314, %v276
  %v331 = vadd.f32 %v315, %v278
  %v332 = vadd.f32 %v316, %v281
  %v333 = vadd.f32 %v317, %v283
  %v334 = vadd.f32 %v318, %v286
  %v335 = vadd.f32 %v319, %v288
  %v336 = vadd.f32 %v320, %v291
  %v337 = vadd.f32 %v321, %v293
  %v338 = vadd.f32 %v322, %v296
  %v339 = vadd.f32 %v323, %v298
  %v340 = vadd.f32 %v324, %v301
  %v341 = vadd.f32 %v325, %v303
  %v342 = vadd.f32 %v326, %v306
  %v343 = vadd.f32 %v327, %v308
  %v345 = vperm.slane %v119, 0
  %v347 = vadd.f32 %v328, %v345
  %v348 = vadd.f32 %v329, %v345
  %v349 = vadd.f32 %v330, %v345
  %v350 = vadd.f32 %v331, %v345
  %v351 = vadd.f32 %v332, %v345
  %v352 = vadd.f32 %v333, %v345
  %v353 = vadd.f32 %v334, %v345
  %v354 = vadd.f32 %v335, %v345
  %v355 = vadd.f32 %v336, %v345
  %v356 = vadd.f32 %v337, %v345
  %v357 = vadd.f32 %v338, %v345
  %v358 = vadd.f32 %v339, %v345
  %v359 = vadd.f32 %v340, %v345
  %v360 = vadd.f32 %v341, %v345
  %v361 = vadd.f32 %v342, %v345
  %v362 = vadd.f32 %v343, %v345
  %v363 = vmax.f32 %v347, 0.0
  %v364 = vmax.f32 %v348, 0.0
  %v365 = vmax.f32 %v349, 0.0
  %v366 = vmax.f32 %v350, 0.0
  %v367 = vmax.f32 %v351, 0.0
  %v368 = vmax.f32 %v352, 0.0
  %v369 = vmax.f32 %v353, 0.0
  %v370 = vmax.f32 %v354, 0.0
  %v371 = vmax.f32 %v355, 0.0
  %v372 = vmax.f32 %v356, 0.0
  %v373 = vmax.f32 %v357, 0.0
  %v374 = vmax.f32 %v358, 0.0
  %v375 = vmax.f32 %v359, 0.0
  %v376 = vmax.f32 %v360, 0.0
  %v377 = vmax.f32 %v361, 0.0
  %v378 = vmax.f32 %v362, 0.0
  %v380 = vperm.slane %v136, 0
  %382 = vmatpush.msra.mxu0 %v135
  %383 = vmatpush.msra.mxu0 %v134
  %384 = vmatpush.msra.mxu0 %v133
  %385 = vmatpush.msra.mxu0 %v132
  %386 = vmatpush.msra.mxu0 %v131
  %387 = vmatpush.msra.mxu0 %v130
  %388 = vmatpush.msra.mxu0 %v129
  %389 = vmatpush.msra.mxu0 %v128
  %390 = vmatpush.msra.mxu0 %v127
  %391 = vmatpush.msra.mxu0 %v126
  %392 = vmatpush.msra.mxu0 %v125
  %393 = vmatpush.msra.mxu0 %v124
  %394 = vmatpush.msra.mxu0 %v123
  %395 = vmatpush.msra.mxu0 %v122
  %396 = vmatpush.msra.mxu0 %v121
  %397 = vmatpush.msra.mxu0 %v120
  %398 = vmatmul.f32.gmra.mxu0 %v363
  %v399 = vpop.f32.mrf.mxu0
  %v400 = vadd.f32 %v380, %v399
  %401 = vmatmul.f32.gmra.mxu0 %v364
  %v402 = vpop.f32.mrf.mxu0
  %v403 = vadd.f32 %v380, %v402
  %404 = vmatmul.f32.gmra.mxu0 %v365
  %v405 = vpop.f32.mrf.mxu0
  %v406 = vadd.f32 %v380, %v405
  %407 = vmatmul.f32.gmra.mxu0 %v366
  %v408 = vpop.f32.mrf.mxu0
  %v409 = vadd.f32 %v380, %v408
  %410 = vmatmul.f32.gmra.mxu0 %v367
  %v411 = vpop.f32.mrf.mxu0
  %v412 = vadd.f32 %v380, %v411
  %413 = vmatmul.f32.gmra.mxu0 %v368
  %v414 = vpop.f32.mrf.mxu0
  %v415 = vadd.f32 %v380, %v414
  %416 = vmatmul.f32.gmra.mxu0 %v369
  %v417 = vpop.f32.mrf.mxu0
  %v418 = vadd.f32 %v380, %v417
  %419 = vmatmul.f32.gmra.mxu0 %v370
  %v420 = vpop.f32.mrf.mxu0
  %v421 = vadd.f32 %v380, %v420
  %422 = vmatmul.f32.gmra.mxu0 %v371
  %v423 = vpop.f32.mrf.mxu0
  %v424 = vadd.f32 %v380, %v423
  %425 = vmatmul.f32.gmra.mxu0 %v372
  %v426 = vpop.f32.mrf.mxu0
  %v427 = vadd.f32 %v380, %v426
  %428 = vmatmul.f32.gmra.mxu0 %v373
  %v429 = vpop.f32.mrf.mxu0
  %v430 = vadd.f32 %v380, %v429
  %431 = vmatmul.f32.gmra.mxu0 %v374
  %v432 = vpop.f32.mrf.mxu0
  %v433 = vadd.f32 %v380, %v432
  %434 = vmatmul.f32.gmra.mxu0 %v375
  %v435 = vpop.f32.mrf.mxu0
  %v436 = vadd.f32 %v380, %v435
  %437 = vmatmul.f32.gmra.mxu0 %v376
  %v438 = vpop.f32.mrf.mxu0
  %v439 = vadd.f32 %v380, %v438
  %440 = vmatmul.f32.gmra.mxu0 %v377
  %v441 = vpop.f32.mrf.mxu0
  %v442 = vadd.f32 %v380, %v441
  %443 = vmatmul.f32.gmra.mxu0 %v378
  %v444 = vpop.f32.mrf.mxu0
  %v445 = vadd.f32 %v380, %v444
  %446 = vdwg.mxu0
  %v447 = vmax.f32 %v400, 0.0
  %v448 = vmax.f32 %v403, 0.0
  %v449 = vmax.f32 %v406, 0.0
  %v450 = vmax.f32 %v409, 0.0
  %v451 = vmax.f32 %v412, 0.0
  %v452 = vmax.f32 %v415, 0.0
  %v453 = vmax.f32 %v418, 0.0
  %v454 = vmax.f32 %v421, 0.0
  %v455 = vmax.f32 %v424, 0.0
  %v456 = vmax.f32 %v427, 0.0
  %v457 = vmax.f32 %v430, 0.0
  %v458 = vmax.f32 %v433, 0.0
  %v459 = vmax.f32 %v436, 0.0
  %v460 = vmax.f32 %v439, 0.0
  %v461 = vmax.f32 %v442, 0.0
  %v462 = vmax.f32 %v445, 0.0
  %v464 = vperm.slane %v137, 0
  %v466 = vmul.f32 %v447, %v464
  %v467 = vmul.f32 %v448, %v464
  %v468 = vmul.f32 %v449, %v464
  %v469 = vmul.f32 %v450, %v464
  %v470 = vmul.f32 %v451, %v464
  %v471 = vmul.f32 %v452, %v464
  %v472 = vmul.f32 %v453, %v464
  %v473 = vmul.f32 %v454, %v464
  %v474 = vmul.f32 %v455, %v464
  %v475 = vmul.f32 %v456, %v464
  %v476 = vmul.f32 %v457, %v464
  %v477 = vmul.f32 %v458, %v464
  %v478 = vmul.f32 %v459, %v464
  %v479 = vmul.f32 %v460, %v464
  %v480 = vmul.f32 %v461, %v464
  %v481 = vmul.f32 %v462, %v464
  %v483 = vperm.slane %v138, 0
  %v485 = vadd.f32 %v466, %v483
  %v486 = vadd.f32 %v467, %v483
  %v487 = vadd.f32 %v468, %v483
  %v488 = vadd.f32 %v469, %v483
  %v489 = vadd.f32 %v470, %v483
  %v490 = vadd.f32 %v471, %v483
  %v491 = vadd.f32 %v472, %v483
  %v492 = vadd.f32 %v473, %v483
  %v493 = vadd.f32 %v474, %v483
  %v494 = vadd.f32 %v475, %v483
  %v495 = vadd.f32 %v476, %v483
  %v496 = vadd.f32 %v477, %v483
  %v497 = vadd.f32 %v478, %v483
  %v498 = vadd.f32 %v479, %v483
  %v499 = vadd.f32 %v480, %v483
  %v500 = vadd.f32 %v481, %v483
  %501 = vst [vmem:[#allocation2] sm:$0xff] %v485
  %502 = vst [vmem:[#allocation2 + $0x8] sm:$0xff] %v486
  %503 = vst [vmem:[#allocation2 + $0x10] sm:$0xff] %v487
  %504 = vst [vmem:[#allocation2 + $0x18] sm:$0xff] %v488
  %505 = vst [vmem:[#allocation2 + $0x20] sm:$0xff] %v489
  %506 = vst [vmem:[#allocation2 + $0x28] sm:$0xff] %v490
  %507 = vst [vmem:[#allocation2 + $0x30] sm:$0xff] %v491
  %508 = vst [vmem:[#allocation2 + $0x38] sm:$0xff] %v492
  %509 = vst [vmem:[#allocation2 + $0x40] sm:$0xff] %v493
  %510 = vst [vmem:[#allocation2 + $0x48] sm:$0xff] %v494
  %511 = vst [vmem:[#allocation2 + $0x50] sm:$0xff] %v495
  %512 = vst [vmem:[#allocation2 + $0x58] sm:$0xff] %v496
  %513 = vst [vmem:[#allocation2 + $0x60] sm:$0xff] %v497
  %514 = vst [vmem:[#allocation2 + $0x68] sm:$0xff] %v498
  %515 = vst [vmem:[#allocation2 + $0x70] sm:$0xff] %v499
  %516 = vst [vmem:[#allocation2 + $0x78] sm:$0xff] %v500
  %v517 = vld [vmem:[#allocation2] sm:$0xff]
  %v518 = vld [vmem:[#allocation2 + $0x8] sm:$0xff]
  %v519 = vld [vmem:[#allocation2 + $0x10] sm:$0xff]
  %v520 = vld [vmem:[#allocation2 + $0x18] sm:$0xff]
  %v521 = vld [vmem:[#allocation2 + $0x20] sm:$0xff]
  %v522 = vld [vmem:[#allocation2 + $0x28] sm:$0xff]
  %v523 = vld [vmem:[#allocation2 + $0x30] sm:$0xff]
  %v524 = vld [vmem:[#allocation2 + $0x38] sm:$0xff]
  %v525 = vld [vmem:[#allocation2 + $0x40] sm:$0xff]
  %v526 = vld [vmem:[#allocation2 + $0x48] sm:$0xff]
  %v527 = vld [vmem:[#allocation2 + $0x50] sm:$0xff]
  %v528 = vld [vmem:[#allocation2 + $0x58] sm:$0xff]
  %v529 = vld [vmem:[#allocation2 + $0x60] sm:$0xff]
  %v530 = vld [vmem:[#allocation2 + $0x68] sm:$0xff]
  %v531 = vld [vmem:[#allocation2 + $0x70] sm:$0xff]
  %v532 = vld [vmem:[#allocation2 + $0x78] sm:$0xff]
  %v533 = vld [vmem:[%s9] sm:$0xff]
  %v534 = vld [vmem:[%s9 + $0x8] sm:$0xff]
  %v535 = vld [vmem:[%s9 + $0x10] sm:$0xff]
  %v536 = vld [vmem:[%s9 + $0x18] sm:$0xff]
  %v537 = vld [vmem:[%s9 + $0x20] sm:$0xff]
  %v538 = vld [vmem:[%s9 + $0x28] sm:$0xff]
  %v539 = vld [vmem:[%s9 + $0x30] sm:$0xff]
  %v540 = vld [vmem:[%s9 + $0x38] sm:$0xff]
  %v541 = vld [vmem:[%s9 + $0x40] sm:$0xff]
  %v542 = vld [vmem:[%s9 + $0x48] sm:$0xff]
  %v543 = vld [vmem:[%s9 + $0x50] sm:$0xff]
  %v544 = vld [vmem:[%s9 + $0x58] sm:$0xff]
  %v545 = vld [vmem:[%s9 + $0x60] sm:$0xff]
  %v546 = vld [vmem:[%s9 + $0x68] sm:$0xff]
  %v547 = vld [vmem:[%s9 + $0x70] sm:$0xff]
  %v548 = vld [vmem:[%s9 + $0x78] sm:$0xff]
  %v549 = vld [vmem:[%s10] sm:$0x1]
  %v550 = vld [vmem:[%s11] sm:$0xff]
  %v551 = vld [vmem:[%s11 + $0x8] sm:$0xff]
  %v552 = vld [vmem:[%s11 + $0x10] sm:$0xff]
  %v553 = vld [vmem:[%s11 + $0x18] sm:$0xff]
  %v554 = vld [vmem:[%s11 + $0x20] sm:$0xff]
  %v555 = vld [vmem:[%s11 + $0x28] sm:$0xff]
  %v556 = vld [vmem:[%s11 + $0x30] sm:$0xff]
  %v557 = vld [vmem:[%s11 + $0x38] sm:$0xff]
  %v558 = vld [vmem:[%s11 + $0x40] sm:$0xff]
  %v559 = vld [vmem:[%s11 + $0x48] sm:$0xff]
  %v560 = vld [vmem:[%s11 + $0x50] sm:$0xff]
  %v561 = vld [vmem:[%s11 + $0x58] sm:$0xff]
  %v562 = vld [vmem:[%s11 + $0x60] sm:$0xff]
  %v563 = vld [vmem:[%s11 + $0x68] sm:$0xff]
  %v564 = vld [vmem:[%s11 + $0x70] sm:$0xff]
  %v565 = vld [vmem:[%s11 + $0x78] sm:$0xff]
  %v566 = vld [vmem:[%s12] sm:$0x1]
  %v567 = vld [vmem:[%s13] sm:$0x1]
  %v568 = vld [vmem:[%s14] sm:$0x1]
  %s569 = sld [smem:[#allocation4 + $0x1]]
  %570 = vmatpush.msra.mxu0 %v548
  %571 = vmatpush.msra.mxu0 %v547
  %572 = vmatpush.msra.mxu0 %v546
  %573 = vmatpush.msra.mxu0 %v545
  %574 = vmatpush.msra.mxu0 %v544
  %575 = vmatpush.msra.mxu0 %v543
  %576 = vmatpush.msra.mxu0 %v542
  %577 = vmatpush.msra.mxu0 %v541
  %578 = vmatpush.msra.mxu0 %v540
  %579 = vmatpush.msra.mxu0 %v539
  %580 = vmatpush.msra.mxu0 %v538
  %581 = vmatpush.msra.mxu0 %v537
  %582 = vmatpush.msra.mxu0 %v536
  %583 = vmatpush.msra.mxu0 %v535
  %584 = vmatpush.msra.mxu0 %v534
  %585 = vmatpush.msra.mxu0 %v533
  %586 = vmatmul.f32.gmra.mxu0 %v517
  %v587 = vpop.f32.mrf.mxu0
  %v588 = vadd.f32 0.0, %v587
  %589 = vmatmul.f32.gmra.mxu0 %v518
  %v590 = vpop.f32.mrf.mxu0
  %v591 = vadd.f32 0.0, %v590
  %592 = vmatmul.f32.gmra.mxu0 %v519
  %v593 = vpop.f32.mrf.mxu0
  %v594 = vadd.f32 0.0, %v593
  %595 = vmatmul.f32.gmra.mxu0 %v520
  %v596 = vpop.f32.mrf.mxu0
  %v597 = vadd.f32 0.0, %v596
  %598 = vmatmul.f32.gmra.mxu0 %v521
  %v599 = vpop.f32.mrf.mxu0
  %v600 = vadd.f32 0.0, %v599
  %601 = vmatmul.f32.gmra.mxu0 %v522
  %v602 = vpop.f32.mrf.mxu0
  %v603 = vadd.f32 0.0, %v602
  %604 = vmatmul.f32.gmra.mxu0 %v523
  %v605 = vpop.f32.mrf.mxu0
  %v606 = vadd.f32 0.0, %v605
  %607 = vmatmul.f32.gmra.mxu0 %v524
  %v608 = vpop.f32.mrf.mxu0
  %v609 = vadd.f32 0.0, %v608
  %610 = vmatmul.f32.gmra.mxu0 %v525
  %v611 = vpop.f32.mrf.mxu0
  %v612 = vadd.f32 0.0, %v611
  %613 = vmatmul.f32.gmra.mxu0 %v526
  %v614 = vpop.f32.mrf.mxu0
  %v615 = vadd.f32 0.0, %v614
  %616 = vmatmul.f32.gmra.mxu0 %v527
  %v617 = vpop.f32.mrf.mxu0
  %v618 = vadd.f32 0.0, %v617
  %619 = vmatmul.f32.gmra.mxu0 %v528
  %v620 = vpop.f32.mrf.mxu0
  %v621 = vadd.f32 0.0, %v620
  %622 = vmatmul.f32.gmra.mxu0 %v529
  %v623 = vpop.f32.mrf.mxu0
  %v624 = vadd.f32 0.0, %v623
  %625 = vmatmul.f32.gmra.mxu0 %v530
  %v626 = vpop.f32.mrf.mxu0
  %v627 = vadd.f32 0.0, %v626
  %628 = vmatmul.f32.gmra.mxu0 %v531
  %v629 = vpop.f32.mrf.mxu0
  %v630 = vadd.f32 0.0, %v629
  %631 = vmatmul.f32.gmra.mxu0 %v532
  %v632 = vpop.f32.mrf.mxu0
  %v633 = vadd.f32 0.0, %v632
  %634 = vdwg.mxu0
  %v635 = vpack.c.bf16 %v591, %v588
  %v636 = vpack.c.bf16 %v597, %v594
  %v637 = vpack.c.bf16 %v603, %v600
  %v638 = vpack.c.bf16 %v609, %v606
  %v639 = vpack.c.bf16 %v615, %v612
  %v640 = vpack.c.bf16 %v621, %v618
  %v641 = vpack.c.bf16 %v627, %v624
  %v642 = vpack.c.bf16 %v633, %v630
  %643 = vmatpush.bf16.msra.mxu0 %v642
  %644 = vmatpush.bf16.msra.mxu0 %v641
  %645 = vmatpush.bf16.msra.mxu0 %v640
  %646 = vmatpush.bf16.msra.mxu0 %v639
  %647 = vmatpush.bf16.msra.mxu0 %v638
  %648 = vmatpush.bf16.msra.mxu0 %v637
  %649 = vmatpush.bf16.msra.mxu0 %v636
  %650 = vmatpush.bf16.msra.mxu0 %v635
  %651 = vmatmul.bf16.gmra.mxu0 %v245
  %v652 = vpop.f32.mrf.mxu0
  %v653 = vadd.f32 0.0, %v652
  %v654 = vpop.f32.mrf.mxu0
  %v655 = vadd.f32 0.0, %v654
  %656 = vmatmul.bf16.gmra.mxu0 %v246
  %v657 = vpop.f32.mrf.mxu0
  %v658 = vadd.f32 0.0, %v657
  %v659 = vpop.f32.mrf.mxu0
  %v660 = vadd.f32 0.0, %v659
  %661 = vmatmul.bf16.gmra.mxu0 %v247
  %v662 = vpop.f32.mrf.mxu0
  %v663 = vadd.f32 0.0, %v662
  %v664 = vpop.f32.mrf.mxu0
  %v665 = vadd.f32 0.0, %v664
  %666 = vmatmul.bf16.gmra.mxu0 %v248
  %v667 = vpop.f32.mrf.mxu0
  %v668 = vadd.f32 0.0, %v667
  %v669 = vpop.f32.mrf.mxu0
  %v670 = vadd.f32 0.0, %v669
  %671 = vmatmul.bf16.gmra.mxu0 %v249
  %v672 = vpop.f32.mrf.mxu0
  %v673 = vadd.f32 0.0, %v672
  %v674 = vpop.f32.mrf.mxu0
  %v675 = vadd.f32 0.0, %v674
  %676 = vmatmul.bf16.gmra.mxu0 %v250
  %v677 = vpop.f32.mrf.mxu0
  %v678 = vadd.f32 0.0, %v677
  %v679 = vpop.f32.mrf.mxu0
  %v680 = vadd.f32 0.0, %v679
  %681 = vmatmul.bf16.gmra.mxu0 %v251
  %v682 = vpop.f32.mrf.mxu0
  %v683 = vadd.f32 0.0, %v682
  %v684 = vpop.f32.mrf.mxu0
  %v685 = vadd.f32 0.0, %v684
  %686 = vmatmul.bf16.gmra.mxu0 %v252
  %v687 = vpop.f32.mrf.mxu0
  %v688 = vadd.f32 0.0, %v687
  %v689 = vpop.f32.mrf.mxu0
  %v690 = vadd.f32 0.0, %v689
  %691 = vdwg.mxu0
  %s692 = sadd.f32 %s569, 1.0
  %v693 = vstv %s692
  %v694 = vmul.f32 %v693, %v588
  %v695 = vmul.f32 %v693, %v591
  %v696 = vmul.f32 %v693, %v594
  %v697 = vmul.f32 %v693, %v597
  %v698 = vmul.f32 %v693, %v600
  %v699 = vmul.f32 %v693, %v603
  %v700 = vmul.f32 %v693, %v606
  %v701 = vmul.f32 %v693, %v609
  %v702 = vmul.f32 %v693, %v612
  %v703 = vmul.f32 %v693, %v615
  %v704 = vmul.f32 %v693, %v618
  %v705 = vmul.f32 %v693, %v621
  %v706 = vmul.f32 %v693, %v624
  %v707 = vmul.f32 %v693, %v627
  %v708 = vmul.f32 %v693, %v630
  %v709 = vmul.f32 %v693, %v633
  %v710 = vadd.f32 %v694, %v653
  %v711 = vadd.f32 %v695, %v655
  %v712 = vadd.f32 %v696, %v658
  %v713 = vadd.f32 %v697, %v660
  %v714 = vadd.f32 %v698, %v663
  %v715 = vadd.f32 %v699, %v665
  %v716 = vadd.f32 %v700, %v668
  %v717 = vadd.f32 %v701, %v670
  %v718 = vadd.f32 %v702, %v673
  %v719 = vadd.f32 %v703, %v675
  %v720 = vadd.f32 %v704, %v678
  %v721 = vadd.f32 %v705, %v680
  %v722 = vadd.f32 %v706, %v683
  %v723 = vadd.f32 %v707, %v685
  %v724 = vadd.f32 %v708, %v688
  %v725 = vadd.f32 %v709, %v690
  %v727 = vperm.slane %v549, 0
  %v729 = vadd.f32 %v710, %v727
  %v730 = vadd.f32 %v711, %v727
  %v731 = vadd.f32 %v712, %v727
  %v732 = vadd.f32 %v713, %v727
  %v733 = vadd.f32 %v714, %v727
  %v734 = vadd.f32 %v715, %v727
  %v735 = vadd.f32 %v716, %v727
  %v736 = vadd.f32 %v717, %v727
  %v737 = vadd.f32 %v718, %v727
  %v738 = vadd.f32 %v719, %v727
  %v739 = vadd.f32 %v720, %v727
  %v740 = vadd.f32 %v721, %v727
  %v741 = vadd.f32 %v722, %v727
  %v742 = vadd.f32 %v723, %v727
  %v743 = vadd.f32 %v724, %v727
  %v744 = vadd.f32 %v725, %v727
  %v745 = vmax.f32 %v729, 0.0
  %v746 = vmax.f32 %v730, 0.0
  %v747 = vmax.f32 %v731, 0.0
  %v748 = vmax.f32 %v732, 0.0
  %v749 = vmax.f32 %v733, 0.0
  %v750 = vmax.f32 %v734, 0.0
  %v751 = vmax.f32 %v735, 0.0
  %v752 = vmax.f32 %v736, 0.0
  %v753 = vmax.f32 %v737, 0.0
  %v754 = vmax.f32 %v738, 0.0
  %v755 = vmax.f32 %v739, 0.0
  %v756 = vmax.f32 %v740, 0.0
  %v757 = vmax.f32 %v741, 0.0
  %v758 = vmax.f32 %v742, 0.0
  %v759 = vmax.f32 %v743, 0.0
  %v760 = vmax.f32 %v744, 0.0
  %v762 = vperm.slane %v566, 0
  %764 = vmatpush.msra.mxu0 %v565
  %765 = vmatpush.msra.mxu0 %v564
  %766 = vmatpush.msra.mxu0 %v563
  %767 = vmatpush.msra.mxu0 %v562
  %768 = vmatpush.msra.mxu0 %v561
  %769 = vmatpush.msra.mxu0 %v560
  %770 = vmatpush.msra.mxu0 %v559
  %771 = vmatpush.msra.mxu0 %v558
  %772 = vmatpush.msra.mxu0 %v557
  %773 = vmatpush.msra.mxu0 %v556
  %774 = vmatpush.msra.mxu0 %v555
  %775 = vmatpush.msra.mxu0 %v554
  %776 = vmatpush.msra.mxu0 %v553
  %777 = vmatpush.msra.mxu0 %v552
  %778 = vmatpush.msra.mxu0 %v551
  %779 = vmatpush.msra.mxu0 %v550
  %780 = vmatmul.f32.gmra.mxu0 %v745
  %v781 = vpop.f32.mrf.mxu0
  %v782 = vadd.f32 %v762, %v781
  %783 = vmatmul.f32.gmra.mxu0 %v746
  %v784 = vpop.f32.mrf.mxu0
  %v785 = vadd.f32 %v762, %v784
  %786 = vmatmul.f32.gmra.mxu0 %v747
  %v787 = vpop.f32.mrf.mxu0
  %v788 = vadd.f32 %v762, %v787
  %789 = vmatmul.f32.gmra.mxu0 %v748
  %v790 = vpop.f32.mrf.mxu0
  %v791 = vadd.f32 %v762, %v790
  %792 = vmatmul.f32.gmra.mxu0 %v749
  %v793 = vpop.f32.mrf.mxu0
  %v794 = vadd.f32 %v762, %v793
  %795 = vmatmul.f32.gmra.mxu0 %v750
  %v796 = vpop.f32.mrf.mxu0
  %v797 = vadd.f32 %v762, %v796
  %798 = vmatmul.f32.gmra.mxu0 %v751
  %v799 = vpop.f32.mrf.mxu0
  %v800 = vadd.f32 %v762, %v799
  %801 = vmatmul.f32.gmra.mxu0 %v752
  %v802 = vpop.f32.mrf.mxu0
  %v803 = vadd.f32 %v762, %v802
  %804 = vmatmul.f32.gmra.mxu0 %v753
  %v805 = vpop.f32.mrf.mxu0
  %v806 = vadd.f32 %v762, %v805
  %807 = vmatmul.f32.gmra.mxu0 %v754
  %v808 = vpop.f32.mrf.mxu0
  %v809 = vadd.f32 %v762, %v808
  %810 = vmatmul.f32.gmra.mxu0 %v755
  %v811 = vpop.f32.mrf.mxu0
  %v812 = vadd.f32 %v762, %v811
  %813 = vmatmul.f32.gmra.mxu0 %v756
  %v814 = vpop.f32.mrf.mxu0
  %v815 = vadd.f32 %v762, %v814
  %816 = vmatmul.f32.gmra.mxu0 %v757
  %v817 = vpop.f32.mrf.mxu0
  %v818 = vadd.f32 %v762, %v817
  %819 = vmatmul.f32.gmra.mxu0 %v758
  %v820 = vpop.f32.mrf.mxu0
  %v821 = vadd.f32 %v762, %v820
  %822 = vmatmul.f32.gmra.mxu0 %v759
  %v823 = vpop.f32.mrf.mxu0
  %v824 = vadd.f32 %v762, %v823
  %825 = vmatmul.f32.gmra.mxu0 %v760
  %v826 = vpop.f32.mrf.mxu0
  %v827 = vadd.f32 %v762, %v826
  %828 = vdwg.mxu0
  %v829 = vmax.f32 %v782, 0.0
  %v830 = vmax.f32 %v785, 0.0
  %v831 = vmax.f32 %v788, 0.0
  %v832 = vmax.f32 %v791, 0.0
  %v833 = vmax.f32 %v794, 0.0
  %v834 = vmax.f32 %v797, 0.0
  %v835 = vmax.f32 %v800, 0.0
  %v836 = vmax.f32 %v803, 0.0
  %v837 = vmax.f32 %v806, 0.0
  %v838 = vmax.f32 %v809, 0.0
  %v839 = vmax.f32 %v812, 0.0
  %v840 = vmax.f32 %v815, 0.0
  %v841 = vmax.f32 %v818, 0.0
  %v842 = vmax.f32 %v821, 0.0
  %v843 = vmax.f32 %v824, 0.0
  %v844 = vmax.f32 %v827, 0.0
  %v846 = vperm.slane %v567, 0
  %v848 = vmul.f32 %v829, %v846
  %v849 = vmul.f32 %v830, %v846
  %v850 = vmul.f32 %v831, %v846
  %v851 = vmul.f32 %v832, %v846
  %v852 = vmul.f32 %v833, %v846
  %v853 = vmul.f32 %v834, %v846
  %v854 = vmul.f32 %v835, %v846
  %v855 = vmul.f32 %v836, %v846
  %v856 = vmul.f32 %v837, %v846
  %v857 = vmul.f32 %v838, %v846
  %v858 = vmul.f32 %v839, %v846
  %v859 = vmul.f32 %v840, %v846
  %v860 = vmul.f32 %v841, %v846
  %v861 = vmul.f32 %v842, %v846
  %v862 = vmul.f32 %v843, %v846
  %v863 = vmul.f32 %v844, %v846
  %v865 = vperm.slane %v568, 0
  %v867 = vadd.f32 %v848, %v865
  %v868 = vadd.f32 %v849, %v865
  %v869 = vadd.f32 %v850, %v865
  %v870 = vadd.f32 %v851, %v865
  %v871 = vadd.f32 %v852, %v865
  %v872 = vadd.f32 %v853, %v865
  %v873 = vadd.f32 %v854, %v865
  %v874 = vadd.f32 %v855, %v865
  %v875 = vadd.f32 %v856, %v865
  %v876 = vadd.f32 %v857, %v865
  %v877 = vadd.f32 %v858, %v865
  %v878 = vadd.f32 %v859, %v865
  %v879 = vadd.f32 %v860, %v865
  %v880 = vadd.f32 %v861, %v865
  %v881 = vadd.f32 %v862, %v865
  %v882 = vadd.f32 %v863, %v865
  %883 = vst [vmem:[#allocation2] sm:$0xff] %v867
  %884 = vst [vmem:[#allocation2 + $0x8] sm:$0xff] %v868
  %885 = vst [vmem:[#allocation2 + $0x10] sm:$0xff] %v869
  %886 = vst [vmem:[#allocation2 + $0x18] sm:$0xff] %v870
  %887 = vst [vmem:[#allocation2 + $0x20] sm:$0xff] %v871
  %888 = vst [vmem:[#allocation2 + $0x28] sm:$0xff] %v872
  %889 = vst [vmem:[#allocation2 + $0x30] sm:$0xff] %v873
  %890 = vst [vmem:[#allocation2 + $0x38] sm:$0xff] %v874
  %891 = vst [vmem:[#allocation2 + $0x40] sm:$0xff] %v875
  %892 = vst [vmem:[#allocation2 + $0x48] sm:$0xff] %v876
  %893 = vst [vmem:[#allocation2 + $0x50] sm:$0xff] %v877
  %894 = vst [vmem:[#allocation2 + $0x58] sm:$0xff] %v878
  %895 = vst [vmem:[#allocation2 + $0x60] sm:$0xff] %v879
  %896 = vst [vmem:[#allocation2 + $0x68] sm:$0xff] %v880
  %897 = vst [vmem:[#allocation2 + $0x70] sm:$0xff] %v881
  %898 = vst [vmem:[#allocation2 + $0x78] sm:$0xff] %v882
  %v899 = vld [vmem:[#allocation2] sm:$0xff]
  %v900 = vld [vmem:[#allocation2 + $0x8] sm:$0xff]
  %v901 = vld [vmem:[#allocation2 + $0x10] sm:$0xff]
  %v902 = vld [vmem:[#allocation2 + $0x18] sm:$0xff]
  %v903 = vld [vmem:[#allocation2 + $0x20] sm:$0xff]
  %v904 = vld [vmem:[#allocation2 + $0x28] sm:$0xff]
  %v905 = vld [vmem:[#allocation2 + $0x30] sm:$0xff]
  %v906 = vld [vmem:[#allocation2 + $0x38] sm:$0xff]
  %v907 = vld [vmem:[#allocation2 + $0x40] sm:$0xff]
  %v908 = vld [vmem:[#allocation2 + $0x48] sm:$0xff]
  %v909 = vld [vmem:[#allocation2 + $0x50] sm:$0xff]
  %v910 = vld [vmem:[#allocation2 + $0x58] sm:$0xff]
  %v911 = vld [vmem:[#allocation2 + $0x60] sm:$0xff]
  %v912 = vld [vmem:[#allocation2 + $0x68] sm:$0xff]
  %v913 = vld [vmem:[#allocation2 + $0x70] sm:$0xff]
  %v914 = vld [vmem:[#allocation2 + $0x78] sm:$0xff]
  %s915 = scalar_lea.vmem %s9, 128
  %v916 = vld [vmem:[%s915] sm:$0xff]
  %v917 = vld [vmem:[%s915 + $0x8] sm:$0xff]
  %v918 = vld [vmem:[%s915 + $0x10] sm:$0xff]
  %v919 = vld [vmem:[%s915 + $0x18] sm:$0xff]
  %v920 = vld [vmem:[%s915 + $0x20] sm:$0xff]
  %v921 = vld [vmem:[%s915 + $0x28] sm:$0xff]
  %v922 = vld [vmem:[%s915 + $0x30] sm:$0xff]
  %v923 = vld [vmem:[%s915 + $0x38] sm:$0xff]
  %v924 = vld [vmem:[%s915 + $0x40] sm:$0xff]
  %v925 = vld [vmem:[%s915 + $0x48] sm:$0xff]
  %v926 = vld [vmem:[%s915 + $0x50] sm:$0xff]
  %v927 = vld [vmem:[%s915 + $0x58] sm:$0xff]
  %v928 = vld [vmem:[%s915 + $0x60] sm:$0xff]
  %v929 = vld [vmem:[%s915 + $0x68] sm:$0xff]
  %v930 = vld [vmem:[%s915 + $0x70] sm:$0xff]
  %v931 = vld [vmem:[%s915 + $0x78] sm:$0xff]
  %s932 = scalar_lea.vmem %s10, 1
  %v933 = vld [vmem:[%s932] sm:$0x1]
  %s934 = scalar_lea.vmem %s11, 128
  %v935 = vld [vmem:[%s934] sm:$0xff]
  %v936 = vld [vmem:[%s934 + $0x8] sm:$0xff]
  %v937 = vld [vmem:[%s934 + $0x10] sm:$0xff]
  %v938 = vld [vmem:[%s934 + $0x18] sm:$0xff]
  %v939 = vld [vmem:[%s934 + $0x20] sm:$0xff]
  %v940 = vld [vmem:[%s934 + $0x28] sm:$0xff]
  %v941 = vld [vmem:[%s934 + $0x30] sm:$0xff]
  %v942 = vld [vmem:[%s934 + $0x38] sm:$0xff]
  %v943 = vld [vmem:[%s934 + $0x40] sm:$0xff]
  %v944 = vld [vmem:[%s934 + $0x48] sm:$0xff]
  %v945 = vld [vmem:[%s934 + $0x50] sm:$0xff]
  %v946 = vld [vmem:[%s934 + $0x58] sm:$0xff]
  %v947 = vld [vmem:[%s934 + $0x60] sm:$0xff]
  %v948 = vld [vmem:[%s934 + $0x68] sm:$0xff]
  %v949 = vld [vmem:[%s934 + $0x70] sm:$0xff]
  %v950 = vld [vmem:[%s934 + $0x78] sm:$0xff]
  %s951 = scalar_lea.vmem %s12, 1
  %v952 = vld [vmem:[%s951] sm:$0x1]
  %s953 = scalar_lea.vmem %s13, 1
  %v954 = vld [vmem:[%s953] sm:$0x1]
  %s955 = scalar_lea.vmem %s14, 1
  %v956 = vld [vmem:[%s955] sm:$0x1]
  %s957 = sld [smem:[#allocation4 + $0x2]]
  %958 = vmatpush.msra.mxu0 %v931
  %959 = vmatpush.msra.mxu0 %v930
  %960 = vmatpush.msra.mxu0 %v929
  %961 = vmatpush.msra.mxu0 %v928
  %962 = vmatpush.msra.mxu0 %v927
  %963 = vmatpush.msra.mxu0 %v926
  %964 = vmatpush.msra.mxu0 %v925
  %965 = vmatpush.msra.mxu0 %v924
  %966 = vmatpush.msra.mxu0 %v923
  %967 = vmatpush.msra.mxu0 %v922
  %968 = vmatpush.msra.mxu0 %v921
  %969 = vmatpush.msra.mxu0 %v920
  %970 = vmatpush.msra.mxu0 %v919
  %971 = vmatpush.msra.mxu0 %v918
  %972 = vmatpush.msra.mxu0 %v917
  %973 = vmatpush.msra.mxu0 %v916
  %974 = vmatmul.f32.gmra.mxu0 %v899
  %v975 = vpop.f32.mrf.mxu0
  %v976 = vadd.f32 0.0, %v975
  %977 = vmatmul.f32.gmra.mxu0 %v900
  %v978 = vpop.f32.mrf.mxu0
  %v979 = vadd.f32 0.0, %v978
  %980 = vmatmul.f32.gmra.mxu0 %v901
  %v981 = vpop.f32.mrf.mxu0
  %v982 = vadd.f32 0.0, %v981
  %983 = vmatmul.f32.gmra.mxu0 %v902
  %v984 = vpop.f32.mrf.mxu0
  %v985 = vadd.f32 0.0, %v984
  %986 = vmatmul.f32.gmra.mxu0 %v903
  %v987 = vpop.f32.mrf.mxu0
  %v988 = vadd.f32 0.0, %v987
  %989 = vmatmul.f32.gmra.mxu0 %v904
  %v990 = vpop.f32.mrf.mxu0
  %v991 = vadd.f32 0.0, %v990
  %992 = vmatmul.f32.gmra.mxu0 %v905
  %v993 = vpop.f32.mrf.mxu0
  %v994 = vadd.f32 0.0, %v993
  %995 = vmatmul.f32.gmra.mxu0 %v906
  %v996 = vpop.f32.mrf.mxu0
  %v997 = vadd.f32 0.0, %v996
  %998 = vmatmul.f32.gmra.mxu0 %v907
  %v999 = vpop.f32.mrf.mxu0
  %v1000 = vadd.f32 0.0, %v999
  %1001 = vmatmul.f32.gmra.mxu0 %v908
  %v1002 = vpop.f32.mrf.mxu0
  %v1003 = vadd.f32 0.0, %v1002
  %1004 = vmatmul.f32.gmra.mxu0 %v909
  %v1005 = vpop.f32.mrf.mxu0
  %v1006 = vadd.f32 0.0, %v1005
  %1007 = vmatmul.f32.gmra.mxu0 %v910
  %v1008 = vpop.f32.mrf.mxu0
  %v1009 = vadd.f32 0.0, %v1008
  %1010 = vmatmul.f32.gmra.mxu0 %v911
  %v1011 = vpop.f32.mrf.mxu0
  %v1012 = vadd.f32 0.0, %v1011
  %1013 = vmatmul.f32.gmra.mxu0 %v912
  %v1014 = vpop.f32.mrf.mxu0
  %v1015 = vadd.f32 0.0, %v1014
  %1016 = vmatmul.f32.gmra.mxu0 %v913
  %v1017 = vpop.f32.mrf.mxu0
  %v1018 = vadd.f32 0.0, %v1017
  %1019 = vmatmul.f32.gmra.mxu0 %v914
  %v1020 = vpop.f32.mrf.mxu0
  %v1021 = vadd.f32 0.0, %v1020
  %1022 = vdwg.mxu0
  %v1023 = vpack.c.bf16 %v979, %v976
  %v1024 = vpack.c.bf16 %v985, %v982
  %v1025 = vpack.c.bf16 %v991, %v988
  %v1026 = vpack.c.bf16 %v997, %v994
  %v1027 = vpack.c.bf16 %v1003, %v1000
  %v1028 = vpack.c.bf16 %v1009, %v1006
  %v1029 = vpack.c.bf16 %v1015, %v1012
  %v1030 = vpack.c.bf16 %v1021, %v1018
  %1031 = vmatpush.bf16.msra.mxu0 %v1030
  %1032 = vmatpush.bf16.msra.mxu0 %v1029
  %1033 = vmatpush.bf16.msra.mxu0 %v1028
  %1034 = vmatpush.bf16.msra.mxu0 %v1027
  %1035 = vmatpush.bf16.msra.mxu0 %v1026
  %1036 = vmatpush.bf16.msra.mxu0 %v1025
  %1037 = vmatpush.bf16.msra.mxu0 %v1024
  %1038 = vmatpush.bf16.msra.mxu0 %v1023
  %1039 = vmatmul.bf16.gmra.mxu0 %v245
  %v1040 = vpop.f32.mrf.mxu0
  %v1041 = vadd.f32 0.0, %v1040
  %v1042 = vpop.f32.mrf.mxu0
  %v1043 = vadd.f32 0.0, %v1042
  %1044 = vmatmul.bf16.gmra.mxu0 %v246
  %v1045 = vpop.f32.mrf.mxu0
  %v1046 = vadd.f32 0.0, %v1045
  %v1047 = vpop.f32.mrf.mxu0
  %v1048 = vadd.f32 0.0, %v1047
  %1049 = vmatmul.bf16.gmra.mxu0 %v247
  %v1050 = vpop.f32.mrf.mxu0
  %v1051 = vadd.f32 0.0, %v1050
  %v1052 = vpop.f32.mrf.mxu0
  %v1053 = vadd.f32 0.0, %v1052
  %1054 = vmatmul.bf16.gmra.mxu0 %v248
  %v1055 = vpop.f32.mrf.mxu0
  %v1056 = vadd.f32 0.0, %v1055
  %v1057 = vpop.f32.mrf.mxu0
  %v1058 = vadd.f32 0.0, %v1057
  %1059 = vmatmul.bf16.gmra.mxu0 %v249
  %v1060 = vpop.f32.mrf.mxu0
  %v1061 = vadd.f32 0.0, %v1060
  %v1062 = vpop.f32.mrf.mxu0
  %v1063 = vadd.f32 0.0, %v1062
  %1064 = vmatmul.bf16.gmra.mxu0 %v250
  %v1065 = vpop.f32.mrf.mxu0
  %v1066 = vadd.f32 0.0, %v1065
  %v1067 = vpop.f32.mrf.mxu0
  %v1068 = vadd.f32 0.0, %v1067
  %1069 = vmatmul.bf16.gmra.mxu0 %v251
  %v1070 = vpop.f32.mrf.mxu0
  %v1071 = vadd.f32 0.0, %v1070
  %v1072 = vpop.f32.mrf.mxu0
  %v1073 = vadd.f32 0.0, %v1072
  %1074 = vmatmul.bf16.gmra.mxu0 %v252
  %v1075 = vpop.f32.mrf.mxu0
  %v1076 = vadd.f32 0.0, %v1075
  %v1077 = vpop.f32.mrf.mxu0
  %v1078 = vadd.f32 0.0, %v1077
  %1079 = vdwg.mxu0
  %s1080 = sadd.f32 %s957, 1.0
  %v1081 = vstv %s1080
  %v1082 = vmul.f32 %v1081, %v976
  %v1083 = vmul.f32 %v1081, %v979
  %v1084 = vmul.f32 %v1081, %v982
  %v1085 = vmul.f32 %v1081, %v985
  %v1086 = vmul.f32 %v1081, %v988
  %v1087 = vmul.f32 %v1081, %v991
  %v1088 = vmul.f32 %v1081, %v994
  %v1089 = vmul.f32 %v1081, %v997
  %v1090 = vmul.f32 %v1081, %v1000
  %v1091 = vmul.f32 %v1081, %v1003
  %v1092 = vmul.f32 %v1081, %v1006
  %v1093 = vmul.f32 %v1081, %v1009
  %v1094 = vmul.f32 %v1081, %v1012
  %v1095 = vmul.f32 %v1081, %v1015
  %v1096 = vmul.f32 %v1081, %v1018
  %v1097 = vmul.f32 %v1081, %v1021
  %v1098 = vadd.f32 %v1082, %v1041
  %v1099 = vadd.f32 %v1083, %v1043
  %v1100 = vadd.f32 %v1084, %v1046
  %v1101 = vadd.f32 %v1085, %v1048
  %v1102 = vadd.f32 %v1086, %v1051
  %v1103 = vadd.f32 %v1087, %v1053
  %v1104 = vadd.f32 %v1088, %v1056
  %v1105 = vadd.f32 %v1089, %v1058
  %v1106 = vadd.f32 %v1090, %v1061
  %v1107 = vadd.f32 %v1091, %v1063
  %v1108 = vadd.f32 %v1092, %v1066
  %v1109 = vadd.f32 %v1093, %v1068
  %v1110 = vadd.f32 %v1094, %v1071
  %v1111 = vadd.f32 %v1095, %v1073
  %v1112 = vadd.f32 %v1096, %v1076
  %v1113 = vadd.f32 %v1097, %v1078
  %v1115 = vperm.slane %v933, 0
  %v1117 = vadd.f32 %v1098, %v1115
  %v1118 = vadd.f32 %v1099, %v1115
  %v1119 = vadd.f32 %v1100, %v1115
  %v1120 = vadd.f32 %v1101, %v1115
  %v1121 = vadd.f32 %v1102, %v1115
  %v1122 = vadd.f32 %v1103, %v1115
  %v1123 = vadd.f32 %v1104, %v1115
  %v1124 = vadd.f32 %v1105, %v1115
  %v1125 = vadd.f32 %v1106, %v1115
  %v1126 = vadd.f32 %v1107, %v1115
  %v1127 = vadd.f32 %v1108, %v1115
  %v1128 = vadd.f32 %v1109, %v1115
  %v1129 = vadd.f32 %v1110, %v1115
  %v1130 = vadd.f32 %v1111, %v1115
  %v1131 = vadd.f32 %v1112, %v1115
  %v1132 = vadd.f32 %v1113, %v1115
  %v1133 = vmax.f32 %v1117, 0.0
  %v1134 = vmax.f32 %v1118, 0.0
  %v1135 = vmax.f32 %v1119, 0.0
  %v1136 = vmax.f32 %v1120, 0.0
  %v1137 = vmax.f32 %v1121, 0.0
  %v1138 = vmax.f32 %v1122, 0.0
  %v1139 = vmax.f32 %v1123, 0.0
  %v1140 = vmax.f32 %v1124, 0.0
  %v1141 = vmax.f32 %v1125, 0.0
  %v1142 = vmax.f32 %v1126, 0.0
  %v1143 = vmax.f32 %v1127, 0.0
  %v1144 = vmax.f32 %v1128, 0.0
  %v1145 = vmax.f32 %v1129, 0.0
  %v1146 = vmax.f32 %v1130, 0.0
  %v1147 = vmax.f32 %v1131, 0.0
  %v1148 = vmax.f32 %v1132, 0.0
  %v1150 = vperm.slane %v952, 0
  %1152 = vmatpush.msra.mxu0 %v950
  %1153 = vmatpush.msra.mxu0 %v949
  %1154 = vmatpush.msra.mxu0 %v948
  %1155 = vmatpush.msra.mxu0 %v947
  %1156 = vmatpush.msra.mxu0 %v946
  %1157 = vmatpush.msra.mxu0 %v945
  %1158 = vmatpush.msra.mxu0 %v944
  %1159 = vmatpush.msra.mxu0 %v943
  %1160 = vmatpush.msra.mxu0 %v942
  %1161 = vmatpush.msra.mxu0 %v941
  %1162 = vmatpush.msra.mxu0 %v940
  %1163 = vmatpush.msra.mxu0 %v939
  %1164 = vmatpush.msra.mxu0 %v938
  %1165 = vmatpush.msra.mxu0 %v937
  %1166 = vmatpush.msra.mxu0 %v936
  %1167 = vmatpush.msra.mxu0 %v935
  %1168 = vmatmul.f32.gmra.mxu0 %v1133
  %v1169 = vpop.f32.mrf.mxu0
  %v1170 = vadd.f32 %v1150, %v1169
  %1171 = vmatmul.f32.gmra.mxu0 %v1134
  %v1172 = vpop.f32.mrf.mxu0
  %v1173 = vadd.f32 %v1150, %v1172
  %1174 = vmatmul.f32.gmra.mxu0 %v1135
  %v1175 = vpop.f32.mrf.mxu0
  %v1176 = vadd.f32 %v1150, %v1175
  %1177 = vmatmul.f32.gmra.mxu0 %v1136
  %v1178 = vpop.f32.mrf.mxu0
  %v1179 = vadd.f32 %v1150, %v1178
  %1180 = vmatmul.f32.gmra.mxu0 %v1137
  %v1181 = vpop.f32.mrf.mxu0
  %v1182 = vadd.f32 %v1150, %v1181
  %1183 = vmatmul.f32.gmra.mxu0 %v1138
  %v1184 = vpop.f32.mrf.mxu0
  %v1185 = vadd.f32 %v1150, %v1184
  %1186 = vmatmul.f32.gmra.mxu0 %v1139
  %v1187 = vpop.f32.mrf.mxu0
  %v1188 = vadd.f32 %v1150, %v1187
  %1189 = vmatmul.f32.gmra.mxu0 %v1140
  %v1190 = vpop.f32.mrf.mxu0
  %v1191 = vadd.f32 %v1150, %v1190
  %1192 = vmatmul.f32.gmra.mxu0 %v1141
  %v1193 = vpop.f32.mrf.mxu0
  %v1194 = vadd.f32 %v1150, %v1193
  %1195 = vmatmul.f32.gmra.mxu0 %v1142
  %v1196 = vpop.f32.mrf.mxu0
  %v1197 = vadd.f32 %v1150, %v1196
  %1198 = vmatmul.f32.gmra.mxu0 %v1143
  %v1199 = vpop.f32.mrf.mxu0
  %v1200 = vadd.f32 %v1150, %v1199
  %1201 = vmatmul.f32.gmra.mxu0 %v1144
  %v1202 = vpop.f32.mrf.mxu0
  %v1203 = vadd.f32 %v1150, %v1202
  %1204 = vmatmul.f32.gmra.mxu0 %v1145
  %v1205 = vpop.f32.mrf.mxu0
  %v1206 = vadd.f32 %v1150, %v1205
  %1207 = vmatmul.f32.gmra.mxu0 %v1146
  %v1208 = vpop.f32.mrf.mxu0
  %v1209 = vadd.f32 %v1150, %v1208
  %1210 = vmatmul.f32.gmra.mxu0 %v1147
  %v1211 = vpop.f32.mrf.mxu0
  %v1212 = vadd.f32 %v1150, %v1211
  %1213 = vmatmul.f32.gmra.mxu0 %v1148
  %v1214 = vpop.f32.mrf.mxu0
  %v1215 = vadd.f32 %v1150, %v1214
  %1216 = vdwg.mxu0
  %v1217 = vmax.f32 %v1170, 0.0
  %v1218 = vmax.f32 %v1173, 0.0
  %v1219 = vmax.f32 %v1176, 0.0
  %v1220 = vmax.f32 %v1179, 0.0
  %v1221 = vmax.f32 %v1182, 0.0
  %v1222 = vmax.f32 %v1185, 0.0
  %v1223 = vmax.f32 %v1188, 0.0
  %v1224 = vmax.f32 %v1191, 0.0
  %v1225 = vmax.f32 %v1194, 0.0
  %v1226 = vmax.f32 %v1197, 0.0
  %v1227 = vmax.f32 %v1200, 0.0
  %v1228 = vmax.f32 %v1203, 0.0
  %v1229 = vmax.f32 %v1206, 0.0
  %v1230 = vmax.f32 %v1209, 0.0
  %v1231 = vmax.f32 %v1212, 0.0
  %v1232 = vmax.f32 %v1215, 0.0
  %v1234 = vperm.slane %v954, 0
  %v1236 = vmul.f32 %v1217, %v1234
  %v1237 = vmul.f32 %v1218, %v1234
  %v1238 = vmul.f32 %v1219, %v1234
  %v1239 = vmul.f32 %v1220, %v1234
  %v1240 = vmul.f32 %v1221, %v1234
  %v1241 = vmul.f32 %v1222, %v1234
  %v1242 = vmul.f32 %v1223, %v1234
  %v1243 = vmul.f32 %v1224, %v1234
  %v1244 = vmul.f32 %v1225, %v1234
  %v1245 = vmul.f32 %v1226, %v1234
  %v1246 = vmul.f32 %v1227, %v1234
  %v1247 = vmul.f32 %v1228, %v1234
  %v1248 = vmul.f32 %v1229, %v1234
  %v1249 = vmul.f32 %v1230, %v1234
  %v1250 = vmul.f32 %v1231, %v1234
  %v1251 = vmul.f32 %v1232, %v1234
  %v1253 = vperm.slane %v956, 0
  %v1255 = vadd.f32 %v1236, %v1253
  %v1256 = vadd.f32 %v1237, %v1253
  %v1257 = vadd.f32 %v1238, %v1253
  %v1258 = vadd.f32 %v1239, %v1253
  %v1259 = vadd.f32 %v1240, %v1253
  %v1260 = vadd.f32 %v1241, %v1253
  %v1261 = vadd.f32 %v1242, %v1253
  %v1262 = vadd.f32 %v1243, %v1253
  %v1263 = vadd.f32 %v1244, %v1253
  %v1264 = vadd.f32 %v1245, %v1253
  %v1265 = vadd.f32 %v1246, %v1253
  %v1266 = vadd.f32 %v1247, %v1253
  %v1267 = vadd.f32 %v1248, %v1253
  %v1268 = vadd.f32 %v1249, %v1253
  %v1269 = vadd.f32 %v1250, %v1253
  %v1270 = vadd.f32 %v1251, %v1253
  %1271 = vst [vmem:[#allocation2] sm:$0xff] %v1255
  %1272 = vst [vmem:[#allocation2 + $0x8] sm:$0xff] %v1256
  %1273 = vst [vmem:[#allocation2 + $0x10] sm:$0xff] %v1257
  %1274 = vst [vmem:[#allocation2 + $0x18] sm:$0xff] %v1258
  %1275 = vst [vmem:[#allocation2 + $0x20] sm:$0xff] %v1259
  %1276 = vst [vmem:[#allocation2 + $0x28] sm:$0xff] %v1260
  %1277 = vst [vmem:[#allocation2 + $0x30] sm:$0xff] %v1261
  %1278 = vst [vmem:[#allocation2 + $0x38] sm:$0xff] %v1262
  %1279 = vst [vmem:[#allocation2 + $0x40] sm:$0xff] %v1263
  %1280 = vst [vmem:[#allocation2 + $0x48] sm:$0xff] %v1264
  %1281 = vst [vmem:[#allocation2 + $0x50] sm:$0xff] %v1265
  %1282 = vst [vmem:[#allocation2 + $0x58] sm:$0xff] %v1266
  %1283 = vst [vmem:[#allocation2 + $0x60] sm:$0xff] %v1267
  %1284 = vst [vmem:[#allocation2 + $0x68] sm:$0xff] %v1268
  %1285 = vst [vmem:[#allocation2 + $0x70] sm:$0xff] %v1269
  %1286 = vst [vmem:[#allocation2 + $0x78] sm:$0xff] %v1270
  %v1287 = vld [vmem:[%s15] sm:$0xff]
  %v1288 = vld [vmem:[#allocation2] sm:$0xff]
  %v1289 = vld [vmem:[#allocation2 + $0x8] sm:$0xff]
  %v1290 = vld [vmem:[#allocation2 + $0x10] sm:$0xff]
  %v1291 = vld [vmem:[#allocation2 + $0x18] sm:$0xff]
  %v1292 = vld [vmem:[#allocation2 + $0x20] sm:$0xff]
  %v1293 = vld [vmem:[#allocation2 + $0x28] sm:$0xff]
  %v1294 = vld [vmem:[#allocation2 + $0x30] sm:$0xff]
  %v1295 = vld [vmem:[#allocation2 + $0x38] sm:$0xff]
  %v1296 = vld [vmem:[#allocation2 + $0x40] sm:$0xff]
  %v1297 = vld [vmem:[#allocation2 + $0x48] sm:$0xff]
  %v1298 = vld [vmem:[#allocation2 + $0x50] sm:$0xff]
  %v1299 = vld [vmem:[#allocation2 + $0x58] sm:$0xff]
  %v1300 = vld [vmem:[#allocation2 + $0x60] sm:$0xff]
  %v1301 = vld [vmem:[#allocation2 + $0x68] sm:$0xff]
  %v1302 = vld [vmem:[#allocation2 + $0x70] sm:$0xff]
  %v1303 = vld [vmem:[#allocation2 + $0x78] sm:$0xff]
  %1304 = vmatpush.msra.mxu0 %v1303
  %1305 = vmatpush.msra.mxu0 %v1302
  %1306 = vmatpush.msra.mxu0 %v1301
  %1307 = vmatpush.msra.mxu0 %v1300
  %1308 = vmatpush.msra.mxu0 %v1299
  %1309 = vmatpush.msra.mxu0 %v1298
  %1310 = vmatpush.msra.mxu0 %v1297
  %1311 = vmatpush.msra.mxu0 %v1296
  %1312 = vmatpush.msra.mxu0 %v1295
  %1313 = vmatpush.msra.mxu0 %v1294
  %1314 = vmatpush.msra.mxu0 %v1293
  %1315 = vmatpush.msra.mxu0 %v1292
  %1316 = vmatpush.msra.mxu0 %v1291
  %1317 = vmatpush.msra.mxu0 %v1290
  %1318 = vmatpush.msra.mxu0 %v1289
  %1319 = vmatpush.msra.mxu0 %v1288
  %1320 = vmatmul.f32.gmra.mxu0 %v1287
  %v1321 = vpop.f32.mrf.mxu0
  %v1322 = vadd.f32 0.0, %v1321
  %1323 = vdwg.mxu0
  %v1324 = vld [vmem:[%s16] sm:$0xff]
  %v1325 = vld [vmem:[%s16 + $0x8] sm:$0xff]
  %v1326 = vld [vmem:[%s16 + $0x10] sm:$0xff]
  %v1327 = vld [vmem:[%s16 + $0x18] sm:$0xff]
  %v1328 = vld [vmem:[%s16 + $0x20] sm:$0xff]
  %v1329 = vld [vmem:[%s16 + $0x28] sm:$0xff]
  %v1330 = vld [vmem:[%s16 + $0x30] sm:$0xff]
  %v1331 = vld [vmem:[%s16 + $0x38] sm:$0xff]
  %v1332 = vld [vmem:[%s16 + $0x40] sm:$0xff]
  %v1333 = vld [vmem:[%s16 + $0x48] sm:$0xff]
  %v1334 = vld [vmem:[%s16 + $0x50] sm:$0xff]
  %v1335 = vld [vmem:[%s16 + $0x58] sm:$0xff]
  %v1336 = vld [vmem:[%s16 + $0x60] sm:$0xff]
  %v1337 = vld [vmem:[%s16 + $0x68] sm:$0xff]
  %v1338 = vld [vmem:[%s16 + $0x70] sm:$0xff]
  %v1339 = vld [vmem:[%s16 + $0x78] sm:$0xff]
  %v1340 = vld [vmem:[%s17] sm:$0x1]
  %v1342 = vperm.slane %v1340, 0
  %1344 = vmatpush.msra.mxu0 %v1339
  %1345 = vmatpush.msra.mxu0 %v1338
  %1346 = vmatpush.msra.mxu0 %v1337
  %1347 = vmatpush.msra.mxu0 %v1336
  %1348 = vmatpush.msra.mxu0 %v1335
  %1349 = vmatpush.msra.mxu0 %v1334
  %1350 = vmatpush.msra.mxu0 %v1333
  %1351 = vmatpush.msra.mxu0 %v1332
  %1352 = vmatpush.msra.mxu0 %v1331
  %1353 = vmatpush.msra.mxu0 %v1330
  %1354 = vmatpush.msra.mxu0 %v1329
  %1355 = vmatpush.msra.mxu0 %v1328
  %1356 = vmatpush.msra.mxu0 %v1327
  %1357 = vmatpush.msra.mxu0 %v1326
  %1358 = vmatpush.msra.mxu0 %v1325
  %1359 = vmatpush.msra.mxu0 %v1324
  %1360 = vmatmul.f32.gmra.mxu0 %v1322
  %v1361 = vpop.f32.mrf.mxu0
  %v1362 = vadd.f32 %v1342, %v1361
  %1363 = vdwg.mxu0
  %v1364 = vmax.f32 %v1362, 0.0
  %v1365 = vld [vmem:[%s18] sm:$0xff]
  %v1366 = vld [vmem:[%s18 + $0x8] sm:$0xff]
  %v1367 = vld [vmem:[%s18 + $0x10] sm:$0xff]
  %v1368 = vld [vmem:[%s18 + $0x18] sm:$0xff]
  %v1369 = vld [vmem:[%s18 + $0x20] sm:$0xff]
  %v1370 = vld [vmem:[%s18 + $0x28] sm:$0xff]
  %v1371 = vld [vmem:[%s18 + $0x30] sm:$0xff]
  %v1372 = vld [vmem:[%s18 + $0x38] sm:$0xff]
  %v1373 = vld [vmem:[%s18 + $0x40] sm:$0xff]
  %v1374 = vld [vmem:[%s18 + $0x48] sm:$0xff]
  %v1375 = vld [vmem:[%s18 + $0x50] sm:$0xff]
  %v1376 = vld [vmem:[%s18 + $0x58] sm:$0xff]
  %v1377 = vld [vmem:[%s18 + $0x60] sm:$0xff]
  %v1378 = vld [vmem:[%s18 + $0x68] sm:$0xff]
  %v1379 = vld [vmem:[%s18 + $0x70] sm:$0xff]
  %v1380 = vld [vmem:[%s18 + $0x78] sm:$0xff]
  %v1381 = vld [vmem:[%s19] sm:$0x1]
  %v1383 = vperm.slane %v1381, 0
  %1385 = vmatpush.msra.mxu0 %v1380
  %1386 = vmatpush.msra.mxu0 %v1379
  %1387 = vmatpush.msra.mxu0 %v1378
  %1388 = vmatpush.msra.mxu0 %v1377
  %1389 = vmatpush.msra.mxu0 %v1376
  %1390 = vmatpush.msra.mxu0 %v1375
  %1391 = vmatpush.msra.mxu0 %v1374
  %1392 = vmatpush.msra.mxu0 %v1373
  %1393 = vmatpush.msra.mxu0 %v1372
  %1394 = vmatpush.msra.mxu0 %v1371
  %1395 = vmatpush.msra.mxu0 %v1370
  %1396 = vmatpush.msra.mxu0 %v1369
  %1397 = vmatpush.msra.mxu0 %v1368
  %1398 = vmatpush.msra.mxu0 %v1367
  %1399 = vmatpush.msra.mxu0 %v1366
  %1400 = vmatpush.msra.mxu0 %v1365
  %1401 = vmatmul.f32.gmra.mxu0 %v1364
  %v1402 = vpop.f32.mrf.mxu0
  %v1403 = vadd.f32 %v1383, %v1402
  %1404 = vdwg.mxu0
  %1405 = vmax.xlane.f32.xlu0 %v1403
  %v1406 = vpop.xlane.xlu0 %1405
  %v1407 = vsub.f32 %v1403, %v1406
  %v1408 = vmul.f32 %v1407, 1.442695
  %v1409 = vpow.pop %v1408
  %1410 = vadd.xlane.f32.xlu0 %v1409
  %v1411 = vpop.xlane.xlu0 %1410
  %v1412 = vlog2.pop %v1411
  %v1413 = vmul.f32 %v1412, 0.6931472
  %v1414 = vsub.f32 %v1407, %v1413
  %1415 = vst [vmem:[%s20] sm:$0xff] %v1414
  // Predicated region
  $region78: #{gin_forward.1} parent=0 // pred_check
    _
  $region79: #{gin_forward.1} parent=0 // pred_check_branch
    %1417 = sbr.rel (0) target = $region81
  $region80: #{gin_forward.1} parent=0 // pred_region
    _
  $region81: #{gin_forward.1} parent=0 // pred_fallthru
    _
  // Predicated region
  $region82: #{gin_forward.1} parent=0 // pred_check
    _
  $region83: #{gin_forward.1} parent=0 // pred_check_branch
    %1419 = sbr.rel (0) target = $region85
  $region84: #{gin_forward.1} parent=0 // pred_region
    _
  $region85: #{gin_forward.1} parent=0 // pred_fallthru
    _

</llo_original>
